<compile_context>
chip_gen: v7x
topology: tpu7x:2x2x1
jax: 0.10.0
libtpu: 0.0.40
codegen_flags: <defaults>
</compile_context>

<pallas_src>
import functools
import math

import jax
import jax.numpy as jnp
import numpy as np
from jax.experimental import pallas as pl
from jax.experimental.pallas import tpu as pltpu

# ---------------- problem sizes (small, consistent with the module) ---------
WORD_SIZE = 32     # input feature dim
EMBED_DIM = 16     # per-head embed dim
N_HEAD = 4
N = 16             # Linformer "n" (max / padded sequence length)
K_DIM = 8          # Linformer low-rank projection dim
SEQ_LEN = 12       # actual sequence length (< N, exercises the padding path)
BATCH = 8          # number of independent sequences
BLOCK_B = 4        # sequences per grid step

HE = N_HEAD * EMBED_DIM   # 64
HK = N_HEAD * K_DIM       # 32


def _mm_nt(a, b):
    # a: (M, K), b: (N, K) -> (M, N) == a @ b.T, contraction on last dims.
    return jax.lax.dot_general(
        a, b, (((1,), (1,)), ((), ())), preferred_element_type=jnp.float32
    )


def linformer_kernel(x_ref, w_in_ref, w_ef_ref, misc_ref, o_ref, *, bb):
    """One grid step: `bb` sequences, all heads fused.

    x_ref   : (bb*N, WORD_SIZE)    sequences stacked along rows
    w_in_ref: (3*HE, WORD_SIZE)    rows = [Wq(scaled) | Wk | Wv] for all heads
    w_ef_ref: (2*bb*HK, bb*N)      rows = [We_blockdiag(batch) | Wf_blockdiag]
                                   (seq-len masking folded in host-side)
    misc_ref: (8 + 3*bb*HK + E, HE) row 0 = scaled bq; then head-block mask,
                                   kp bias, vp bias (all batch-tiled); then Wp
    o_ref   : (bb*N, EMBED_DIM)
    """
    rows = bb * N

    x2 = x_ref[...]                                            # (bb*N, WS)

    # Fused QKV for all heads & all sequences: three (bb*N,32)x(32,64) matmuls.
    q2 = _mm_nt(x2, w_in_ref[0:HE, :]) + misc_ref[0:1, :]      # scale & bq folded
    k2 = _mm_nt(x2, w_in_ref[HE:2 * HE, :])                    # bk folded downstream
    v2 = _mm_nt(x2, w_in_ref[2 * HE:3 * HE, :])                # bv folded downstream

    r_mask = 8
    r_kb = r_mask + bb * HK
    r_vb = r_kb + bb * HK
    r_wp = r_vb + bb * HK

    # Block-diagonal-over-heads mask (also reused as the segment-sum map).
    mask_bd = misc_ref[r_mask:r_kb, :]                          # (bb*HK, HE)

    # Linformer E/F projections for the whole block in one matmul each:
    # (bb*HK, bb*N) x (bb*N, HE).  Off-diagonal head blocks are masked out and
    # the (seq-len dependent) be/bf + folded bk/bv biases added block-diagonally.
    kp = (jnp.dot(w_ef_ref[0:bb * HK, :], k2,
                  preferred_element_type=jnp.float32)
          * mask_bd + misc_ref[r_kb:r_vb, :])                   # (bb*HK, HE)
    vp = (jnp.dot(w_ef_ref[bb * HK:2 * bb * HK, :], v2,
                  preferred_element_type=jnp.float32)
          * mask_bd + misc_ref[r_vb:r_wp, :])                   # (bb*HK, HE)

    q3 = q2.reshape(bb, N, HE)
    kp3 = kp.reshape(bb, HK, HE)
    vp3 = vp.reshape(bb, HK, HE)

    # All heads' scores at once: (bb,N,64) x (bb,32,64)^T -> (bb,N,32); head h
    # occupies lanes [h*K_DIM, (h+1)*K_DIM).
    s = jnp.einsum('bne,bke->bnk', q3, kp3,
                   preferred_element_type=jnp.float32)
    # Per-row max over all heads is a valid (shared) shift for per-head softmax.
    p = jnp.exp(s - jnp.max(s, axis=-1, keepdims=True))
    # Unnormalized attention @ V for all heads: (bb,N,32) x (bb,32,64).
    zu = jnp.einsum('bnk,bke->bne', p, vp3,
                    preferred_element_type=jnp.float32)

    # Per-head softmax denominators, broadcast across each head's 16 output
    # lanes via one matmul with the head-block map (first HK rows of the mask).
    denom = jnp.dot(p.reshape(rows, HK), misc_ref[r_mask:r_mask + HK, :],
                    preferred_element_type=jnp.float32)         # (bb*N, HE)
    z2 = zu.reshape(rows, HE) / denom                           # exact division

    # Fused head-mixing projection (Wp, no bias): (bb*N,64) x (64,16).
    o_ref[...] = _mm_nt(z2, misc_ref[r_wp:r_wp + EMBED_DIM, :])


def _head_block_diag(blocks):
    # blocks: (H, K, E) -> (H*K, H*E) block-diagonal (host-side).
    h_, k_, e_ = blocks.shape
    out = jnp.zeros((h_ * k_, h_ * e_), blocks.dtype)
    for h in range(h_):
        out = out.at[h * k_:(h + 1) * k_, h * e_:(h + 1) * e_].set(blocks[h])
    return out


def pack_params(params, seq_len, bb):
    """Host-side packing. seq_len and bb are static (one pack per config)."""
    scale = 1.0 / math.sqrt(float(EMBED_DIM))

    wq = (params["Wq"] * scale).reshape(HE, WORD_SIZE)
    wk = params["Wk"].reshape(HE, WORD_SIZE)
    wv = params["Wv"].reshape(HE, WORD_SIZE)
    w_in = jnp.concatenate([wq, wk, wv], axis=0)                # (3*HE, WS)

    # Zero the columns of We/Wf for padded sequence positions (padding happens
    # AFTER the q/k/v linear in the reference, so those rows contribute nothing).
    valid = (jnp.arange(N) < seq_len).astype(jnp.float32)       # (N,)
    we_m = params["We"] * valid[None, None, :]                  # (H, K, N)
    wf_m = params["Wf"] * valid[None, None, :]

    eye_b = jnp.eye(bb, dtype=jnp.float32)
    we_big = jnp.kron(eye_b, we_m.reshape(HK, N))               # (bb*HK, bb*N)
    wf_big = jnp.kron(eye_b, wf_m.reshape(HK, N))
    w_ef = jnp.concatenate([we_big, wf_big], axis=0)            # (2*bb*HK, bb*N)

    # Head-block mask / biases.  The bk/bv contribution (bias added on the
    # valid rows only, before the E/F projection) is folded in here:
    #   kp_bias[h] = (sum over valid cols of We[h]) (x) bk[h]  +  be[h]
    mask_bd = jnp.kron(jnp.eye(N_HEAD, dtype=jnp.float32),
                       jnp.ones((K_DIM, EMBED_DIM), jnp.float32))  # (HK, HE)
    kbias_h = we_m.sum(-1)[..., None] * params["bk"] + params["be"]  # (H,K,E)
    vbias_h = wf_m.sum(-1)[..., None] * params["bv"] + params["bf"]
    kbias_bd = _head_block_diag(kbias_h)                        # (HK, HE)
    vbias_bd = _head_block_diag(vbias_h)

    bq_rows = jnp.zeros((8, HE), jnp.float32).at[0].set(
        (params["bq"] * scale).reshape(HE))

    misc = jnp.concatenate([
        bq_rows,                                                # rows [0, 8)
        jnp.tile(mask_bd, (bb, 1)),                             # rows [8, 8+bb*HK)
        jnp.tile(kbias_bd, (bb, 1)),
        jnp.tile(vbias_bd, (bb, 1)),
        params["Wp"],                                           # (E, HE)
    ], axis=0)                                                  # (8+3*bb*HK+E, HE)
    return w_in, w_ef, misc


def multihead_linformer(x, params, *, block_b=BLOCK_B):
    """x: (B, seq_len, WORD_SIZE) f32 -> (B, seq_len, EMBED_DIM) f32."""
    B, seq_len, _ = x.shape
    assert seq_len <= N and B % block_b == 0
    bb = block_b

    x_pad = jnp.pad(x, ((0, 0), (0, N - seq_len), (0, 0)))
    x2 = x_pad.reshape(B * N, WORD_SIZE)

    w_in, w_ef, misc = pack_params(params, seq_len, bb)
    kern = functools.partial(linformer_kernel, bb=bb)

    out = pl.pallas_call(
        kern,
        out_shape=jax.ShapeDtypeStruct((B * N, EMBED_DIM), jnp.float32),
        grid=(B // bb,),
        in_specs=[
            pl.BlockSpec((bb * N, WORD_SIZE), lambda b: (b, 0)),
            # Weights: constant index_maps -> DMA'd once, VMEM-resident.
            pl.BlockSpec(w_in.shape, lambda b: (0, 0)),
            pl.BlockSpec(w_ef.shape, lambda b: (0, 0)),
            pl.BlockSpec(misc.shape, lambda b: (0, 0)),
        ],
        out_specs=pl.BlockSpec((bb * N, EMBED_DIM), lambda b: (b, 0)),
        compiler_params=pltpu.CompilerParams(
            dimension_semantics=("parallel",)),
    )(x2, w_in, w_ef, misc)

    return out.reshape(B, N, EMBED_DIM)[:, :seq_len, :]


def reference(x, params):
    """Plain-JAX single-sequence reference mirroring the PyTorch module."""
    seq_len = x.shape[0]
    pad = N - seq_len
    zs = []
    for h in range(N_HEAD):
        q = x @ params["Wq"][h].T + params["bq"][h]
        k = x @ params["Wk"][h].T + params["bk"][h]
        v = x @ params["Wv"][h].T + params["bv"][h]
        q = jnp.pad(q, ((0, pad), (0, 0)))
        k = jnp.pad(k, ((0, pad), (0, 0)))
        v = jnp.pad(v, ((0, pad), (0, 0)))
        k_proj = params["We"][h] @ k + params["be"][h]
        v_proj = params["Wf"][h] @ v + params["bf"][h]
        score = q @ k_proj.T / jnp.sqrt(jnp.float32(EMBED_DIM))
        attn = jax.nn.softmax(score, axis=-1)
        z = attn @ v_proj
        zs.append(z[:seq_len] if pad > 0 else z)
    z_s = jnp.concatenate(zs, axis=1)          # (seq, N_HEAD * EMBED_DIM)
    return z_s @ params["Wp"].T                # (seq, EMBED_DIM)


def init_params(key):
    ks = jax.random.split(key, 12)
    s = 0.1
    return {
        "Wq": s * jax.random.normal(ks[0], (N_HEAD, EMBED_DIM, WORD_SIZE), jnp.float32),
        "bq": s * jax.random.normal(ks[1], (N_HEAD, 1, EMBED_DIM), jnp.float32),
        "Wk": s * jax.random.normal(ks[2], (N_HEAD, EMBED_DIM, WORD_SIZE), jnp.float32),
        "bk": s * jax.random.normal(ks[3], (N_HEAD, 1, EMBED_DIM), jnp.float32),
        "Wv": s * jax.random.normal(ks[4], (N_HEAD, EMBED_DIM, WORD_SIZE), jnp.float32),
        "bv": s * jax.random.normal(ks[5], (N_HEAD, 1, EMBED_DIM), jnp.float32),
        "We": s * jax.random.normal(ks[6], (N_HEAD, K_DIM, N), jnp.float32),
        "be": s * jax.random.normal(ks[7], (N_HEAD, K_DIM, 1), jnp.float32),
        "Wf": s * jax.random.normal(ks[8], (N_HEAD, K_DIM, N), jnp.float32),
        "bf": s * jax.random.normal(ks[9], (N_HEAD, K_DIM, 1), jnp.float32),
        "Wp": s * jax.random.normal(ks[10], (EMBED_DIM, EMBED_DIM * N_HEAD), jnp.float32),
    }


if __name__ == "__main__":
    key = jax.random.PRNGKey(0)
    pkey, xkey = jax.random.split(key)
    params = init_params(pkey)
    x = jax.random.normal(xkey, (BATCH, SEQ_LEN, WORD_SIZE), jnp.float32)

    fwd = jax.jit(multihead_linformer)
    out = jax.block_until_ready(fwd(x, params))

    ref = jax.block_until_ready(
        jnp.stack([reference(x[b], params) for b in range(BATCH)]))

    np.testing.assert_allclose(np.asarray(out), np.asarray(ref),
                               rtol=1e-4, atol=1e-4)
    assert out.shape == (BATCH, SEQ_LEN, EMBED_DIM)
    print("KERNEL_OK")
</pallas_src>

<mosaic_0001>
module attributes {stable_mosaic.version = 11 : i64} {
  func.func @linformer_kernel(%arg0: i32, %arg1: memref<64x32xf32, #tpu.memory_space<vmem>>, %arg2: memref<192x32xf32, #tpu.memory_space<vmem>>, %arg3: memref<256x64xf32, #tpu.memory_space<vmem>>, %arg4: memref<408x64xf32, #tpu.memory_space<vmem>>, %arg5: memref<64x16xf32, #tpu.memory_space<vmem>>) attributes {dimension_semantics = [#tpu.dimension_semantics<parallel>], iteration_bounds = array<i64: 2>, scalar_prefetch = 0 : i64, scratch_operands = 0 : i64, tpu.core_type = #tpu.core_type<tc>, window_params = [{transform_indices = @transform_0, window_bounds = array<i64: 64, 32>}, {pipeline_mode = #tpu.pipeline_mode<synchronous>, transform_indices = @transform_1, window_bounds = array<i64: 192, 32>}, {pipeline_mode = #tpu.pipeline_mode<synchronous>, transform_indices = @transform_2, window_bounds = array<i64: 256, 64>}, {pipeline_mode = #tpu.pipeline_mode<synchronous>, transform_indices = @transform_3, window_bounds = array<i64: 408, 64>}, {transform_indices = @transform_4, window_bounds = array<i64: 64, 16>}]} {
    %c0 = arith.constant 0 : index
    %c0_0 = arith.constant 0 : index
    %0 = vector.load %arg1[%c0, %c0_0] : memref<64x32xf32, #tpu.memory_space<vmem>>, vector<64x32xf32>
    %c0_1 = arith.constant 0 : index
    %c0_2 = arith.constant 0 : index
    %1 = vector.load %arg2[%c0_1, %c0_2] : memref<192x32xf32, #tpu.memory_space<vmem>>, vector<64x32xf32>
    %cst = arith.constant dense<0.000000e+00> : vector<64x64xf32>
    %2 = tpu.matmul %0, %1, %cst {dimension_numbers = #tpu.dot_dimension_numbers<[1], [1], [0], [0], [0, 0, 1, 0], [], []>} : vector<64x32xf32>, vector<64x32xf32>, vector<64x64xf32> -> vector<64x64xf32>
    %c0_3 = arith.constant 0 : index
    %c0_4 = arith.constant 0 : index
    %3 = vector.load %arg4[%c0_3, %c0_4] : memref<408x64xf32, #tpu.memory_space<vmem>>, vector<1x64xf32>
    %4 = vector.broadcast %3 : vector<1x64xf32> to vector<64x64xf32>
    %5 = arith.addf %2, %4 : vector<64x64xf32>
    %c64 = arith.constant 64 : index
    %c0_5 = arith.constant 0 : index
    %6 = vector.load %arg2[%c64, %c0_5] : memref<192x32xf32, #tpu.memory_space<vmem>>, vector<64x32xf32>
    %cst_6 = arith.constant dense<0.000000e+00> : vector<64x64xf32>
    %7 = tpu.matmul %0, %6, %cst_6 {dimension_numbers = #tpu.dot_dimension_numbers<[1], [1], [0], [0], [0, 0, 1, 0], [], []>} : vector<64x32xf32>, vector<64x32xf32>, vector<64x64xf32> -> vector<64x64xf32>
    %c128 = arith.constant 128 : index
    %c0_7 = arith.constant 0 : index
    %8 = vector.load %arg2[%c128, %c0_7] : memref<192x32xf32, #tpu.memory_space<vmem>>, vector<64x32xf32>
    %cst_8 = arith.constant dense<0.000000e+00> : vector<64x64xf32>
    %9 = tpu.matmul %0, %8, %cst_8 {dimension_numbers = #tpu.dot_dimension_numbers<[1], [1], [0], [0], [0, 0, 1, 0], [], []>} : vector<64x32xf32>, vector<64x32xf32>, vector<64x64xf32> -> vector<64x64xf32>
    %c8 = arith.constant 8 : index
    %c0_9 = arith.constant 0 : index
    %10 = vector.load %arg4[%c8, %c0_9] : memref<408x64xf32, #tpu.memory_space<vmem>>, vector<128x64xf32>
    %c0_10 = arith.constant 0 : index
    %c0_11 = arith.constant 0 : index
    %11 = vector.load %arg3[%c0_10, %c0_11] : memref<256x64xf32, #tpu.memory_space<vmem>>, vector<128x64xf32>
    %cst_12 = arith.constant dense<0.000000e+00> : vector<128x64xf32>
    %12 = tpu.matmul %11, %7, %cst_12 {dimension_numbers = #tpu.dot_dimension_numbers<[1], [0], [0], [1], [0, 0, 1, 1], [], []>} : vector<128x64xf32>, vector<64x64xf32>, vector<128x64xf32> -> vector<128x64xf32>
    %13 = arith.mulf %12, %10 : vector<128x64xf32>
    %c136 = arith.constant 136 : index
    %c0_13 = arith.constant 0 : index
    %14 = vector.load %arg4[%c136, %c0_13] : memref<408x64xf32, #tpu.memory_space<vmem>>, vector<128x64xf32>
    %15 = arith.addf %13, %14 : vector<128x64xf32>
    %c128_14 = arith.constant 128 : index
    %c0_15 = arith.constant 0 : index
    %16 = vector.load %arg3[%c128_14, %c0_15] : memref<256x64xf32, #tpu.memory_space<vmem>>, vector<128x64xf32>
    %cst_16 = arith.constant dense<0.000000e+00> : vector<128x64xf32>
    %17 = tpu.matmul %16, %9, %cst_16 {dimension_numbers = #tpu.dot_dimension_numbers<[1], [0], [0], [1], [0, 0, 1, 1], [], []>} : vector<128x64xf32>, vector<64x64xf32>, vector<128x64xf32> -> vector<128x64xf32>
    %18 = arith.mulf %17, %10 : vector<128x64xf32>
    %c264 = arith.constant 264 : index
    %c0_17 = arith.constant 0 : index
    %19 = vector.load %arg4[%c264, %c0_17] : memref<408x64xf32, #tpu.memory_space<vmem>>, vector<128x64xf32>
    %20 = arith.addf %18, %19 : vector<128x64xf32>
    %21 = vector.shape_cast %5 : vector<64x64xf32> to vector<4x16x64xf32>
    %22 = vector.shape_cast %15 : vector<128x64xf32> to vector<4x32x64xf32>
    %23 = vector.shape_cast %20 : vector<128x64xf32> to vector<4x32x64xf32>
    "tpu.trace_start"() <{level = 10 : i32, message = "bne,bke->bnk"}> : () -> ()
    %cst_18 = arith.constant dense<0.000000e+00> : vector<4x16x32xf32>
    %24 = tpu.matmul %21, %22, %cst_18 {dimension_numbers = #tpu.dot_dimension_numbers<[2], [2], [1], [1], [0, 0, 0, 1, 1, 1], [0], [0]>} : vector<4x16x64xf32>, vector<4x32x64xf32>, vector<4x16x32xf32> -> vector<4x16x32xf32>
    "tpu.trace_stop"() : () -> ()
    %cst_19 = arith.constant dense<0xFF800000> : vector<4x16xf32>
    %25 = vector.multi_reduction <maximumf>, %24, %cst_19 [2] : vector<4x16x32xf32> to vector<4x16xf32>
    %26 = vector.shape_cast %25 : vector<4x16xf32> to vector<4x16x1xf32>
    %27 = vector.broadcast %26 : vector<4x16x1xf32> to vector<4x16x32xf32>
    %28 = arith.subf %24, %27 : vector<4x16x32xf32>
    %29 = math.exp %28 : vector<4x16x32xf32>
    "tpu.trace_start"() <{level = 10 : i32, message = "bnk,bke->bne"}> : () -> ()
    %cst_20 = arith.constant dense<0.000000e+00> : vector<4x16x64xf32>
    %30 = tpu.matmul %29, %23, %cst_20 {dimension_numbers = #tpu.dot_dimension_numbers<[2], [1], [1], [2], [0, 0, 0, 1, 1, 2], [0], [0]>} : vector<4x16x32xf32>, vector<4x32x64xf32>, vector<4x16x64xf32> -> vector<4x16x64xf32>
    "tpu.trace_stop"() : () -> ()
    %31 = vector.shape_cast %29 : vector<4x16x32xf32> to vector<64x32xf32>
    %c8_21 = arith.constant 8 : index
    %c0_22 = arith.constant 0 : index
    %32 = vector.load %arg4[%c8_21, %c0_22] : memref<408x64xf32, #tpu.memory_space<vmem>>, vector<32x64xf32>
    %cst_23 = arith.constant dense<0.000000e+00> : vector<64x64xf32>
    %33 = tpu.matmul %31, %32, %cst_23 {dimension_numbers = #tpu.dot_dimension_numbers<[1], [0], [0], [1], [0, 0, 1, 1], [], []>} : vector<64x32xf32>, vector<32x64xf32>, vector<64x64xf32> -> vector<64x64xf32>
    %34 = vector.shape_cast %30 : vector<4x16x64xf32> to vector<64x64xf32>
    %35 = arith.divf %34, %33 : vector<64x64xf32>
    %c392 = arith.constant 392 : index
    %c0_24 = arith.constant 0 : index
    %36 = vector.load %arg4[%c392, %c0_24] : memref<408x64xf32, #tpu.memory_space<vmem>>, vector<16x64xf32>
    %cst_25 = arith.constant dense<0.000000e+00> : vector<64x16xf32>
    %37 = tpu.matmul %35, %36, %cst_25 {dimension_numbers = #tpu.dot_dimension_numbers<[1], [1], [0], [0], [0, 0, 1, 0], [], []>} : vector<64x64xf32>, vector<16x64xf32>, vector<64x16xf32> -> vector<64x16xf32>
    %c0_26 = arith.constant 0 : index
    %c0_27 = arith.constant 0 : index
    %38 = vector.load %arg5[%c0_26, %c0_27] : memref<64x16xf32, #tpu.memory_space<vmem>>, vector<64x16xf32>
    tpu.vector_store %arg5[%c0_26, %c0_27], %37 {strides = array<i32>} : memref<64x16xf32, #tpu.memory_space<vmem>>, vector<64x16xf32>,
    return
  }
  func.func @transform_0(%arg0: i32) -> (i32, i32) {
    %c0_i32 = arith.constant 0 : i32
    %c0_i32_0 = arith.constant 0 : i32
    return %arg0, %c0_i32 : i32, i32
  }
  func.func @transform_1(%arg0: i32) -> (i32, i32) {
    %c0_i32 = arith.constant 0 : i32
    %c0_i32_0 = arith.constant 0 : i32
    %c0_i32_1 = arith.constant 0 : i32
    return %c0_i32, %c0_i32_0 : i32, i32
  }
  func.func @transform_2(%arg0: i32) -> (i32, i32) {
    %c0_i32 = arith.constant 0 : i32
    %c0_i32_0 = arith.constant 0 : i32
    %c0_i32_1 = arith.constant 0 : i32
    return %c0_i32, %c0_i32_0 : i32, i32
  }
  func.func @transform_3(%arg0: i32) -> (i32, i32) {
    %c0_i32 = arith.constant 0 : i32
    %c0_i32_0 = arith.constant 0 : i32
    %c0_i32_1 = arith.constant 0 : i32
    return %c0_i32, %c0_i32_0 : i32, i32
  }
  func.func @transform_4(%arg0: i32) -> (i32, i32) {
    %c0_i32 = arith.constant 0 : i32
    %c0_i32_0 = arith.constant 0 : i32
    return %arg0, %c0_i32 : i32, i32
  }
}

</mosaic_0001>

<llo_original>
// kernel: multihead_linformer.1
$region0: #{multihead_linformer.1}
  #allocation0 [shape = 'u32[]', space=smem, size = 0x4, offset = 0x4, fixed_abs, tag = 'smem constant byte address 0x4 - core index']
  #allocation1 [shape = 'u32[144,128]{1,0:T(1,128)}', space=vmem, size = 0x12000, scoped, tag = 'internal scratch']
  %s0 = inlined_call_operand.vmem [shape: f32[128,32], index: 0, kind: input, shape index: {}]
  %s1 = inlined_call_operand.vmem [shape: f32[192,32], index: 1, kind: input, shape index: {}]
  %s2 = inlined_call_operand.vmem [shape: f32[256,64], index: 2, kind: input, shape index: {}]
  %s3 = inlined_call_operand.vmem [shape: f32[408,64], index: 3, kind: input, shape index: {}]
  %s4 = inlined_call_operand.vmem [shape: f32[128,16], index: 4, kind: output, shape index: {}]
  %s5 = sld [smem:[#allocation0]]
  $region49: #{multihead_linformer.1} parent=0
    _
  %s7 = ssub.s32 1, %s5
  %s8 = scalar_select 0, %s7, %s5
  loop: start=0, step=1, limit=4
  $region2: #{multihead_linformer.1} parent=0 // loop_pre_header
    _
  $region3: #{multihead_linformer.1} parent=0 // loop_header
    %s10 = sphi 0, %s14
    %p11 = scmp.ge.s32.totalorder %s10, 4
    %s20 = sphi 0, %s22
    %s23 = sphi 0, %s20
    %s24 = sphi 0, %s23
    %s40 = sphi 0, %s24
    %s44 = sphi 0, %s44
    %s46 = sphi 0, %s44
    %s47 = sphi 0, %s46
    %s61 = sphi 0, %s47
    %s65 = sphi 0, %s65
    %s67 = sphi 0, %s65
    %s68 = sphi 0, %s67
    %s82 = sphi 0, %s68
    %s86 = sphi 0, %s86
    %s88 = sphi 0, %s86
    %s89 = sphi 0, %s88
    %s103 = sphi 0, %s89
    %s109 = sphi 0, %s111
    %s112 = sphi 0, %s109
    %s113 = sphi 0, %s112
    %s129 = sphi 0, %s113
  $region4: #{multihead_linformer.1} parent=0 // loop_header_branch
    %13 = sbr.rel (%p11) target = $region8
  $region5: #{multihead_linformer.1} parent=0 // loop_body
    %s15 = ssub.s32 %s10, 1
    %s16 = ssub.s32 %s10, 2
    %s17 = sadd.s32 %s10, 1
    %s18 = ssub.s32 %s10, %s17
    %p19 = scmp.eq.s32.totalorder %s18, 0
    %s21 = sadd.s32 %s20, 1
    %s22 = scalar_select %p19, %s20, %s21
    %p25 = pneg %p19
    %p26 = scmp.eq.s32.totalorder %s10, 1
    %p27 = por %p25, %p26
    %p28 = scmp.ne.s32.totalorder %s20, %s23
    %p29 = scmp.eq.s32.totalorder %s10, 0
    %p30 = por %p28, %p29
    %p31 = scmp.ne.s32.totalorder %s20, %s23
    %p32 = scmp.eq.s32.totalorder %s15, 1
    %p33 = por %p31, %p32
    %p34 = scmp.ne.s32.totalorder %s23, %s24
    %p35 = scmp.eq.s32.totalorder %s15, 0
    %p36 = por %p34, %p35
    %p37 = scmp.ne.s32.totalorder %s23, %s24
    %p38 = scmp.eq.s32.totalorder %s16, 1
    %p39 = por %p37, %p38
    %p41 = scmp.ne.s32.totalorder %s24, %s40
    %p42 = scmp.eq.s32.totalorder %s16, 0
    %p43 = por %p41, %p42
    %s45 = sadd.s32 %s44, 1
    %p48 = scmp.eq.s32.totalorder %s10, 1
    %p49 = scmp.ne.s32.totalorder %s44, %s46
    %p50 = scmp.eq.s32.totalorder %s10, 0
    %p51 = por %p49, %p50
    %p52 = scmp.ne.s32.totalorder %s44, %s46
    %p53 = scmp.eq.s32.totalorder %s15, 1
    %p54 = por %p52, %p53
    %p55 = scmp.ne.s32.totalorder %s46, %s47
    %p56 = scmp.eq.s32.totalorder %s15, 0
    %p57 = por %p55, %p56
    %p58 = scmp.ne.s32.totalorder %s46, %s47
    %p59 = scmp.eq.s32.totalorder %s16, 1
    %p60 = por %p58, %p59
    %p62 = scmp.ne.s32.totalorder %s47, %s61
    %p63 = scmp.eq.s32.totalorder %s16, 0
    %p64 = por %p62, %p63
    %s66 = sadd.s32 %s65, 1
    %p69 = scmp.eq.s32.totalorder %s10, 1
    %p70 = scmp.ne.s32.totalorder %s65, %s67
    %p71 = scmp.eq.s32.totalorder %s10, 0
    %p72 = por %p70, %p71
    %p73 = scmp.ne.s32.totalorder %s65, %s67
    %p74 = scmp.eq.s32.totalorder %s15, 1
    %p75 = por %p73, %p74
    %p76 = scmp.ne.s32.totalorder %s67, %s68
    %p77 = scmp.eq.s32.totalorder %s15, 0
    %p78 = por %p76, %p77
    %p79 = scmp.ne.s32.totalorder %s67, %s68
    %p80 = scmp.eq.s32.totalorder %s16, 1
    %p81 = por %p79, %p80
    %p83 = scmp.ne.s32.totalorder %s68, %s82
    %p84 = scmp.eq.s32.totalorder %s16, 0
    %p85 = por %p83, %p84
    %s87 = sadd.s32 %s86, 1
    %p90 = scmp.eq.s32.totalorder %s10, 1
    %p91 = scmp.ne.s32.totalorder %s86, %s88
    %p92 = scmp.eq.s32.totalorder %s10, 0
    %p93 = por %p91, %p92
    %p94 = scmp.ne.s32.totalorder %s86, %s88
    %p95 = scmp.eq.s32.totalorder %s15, 1
    %p96 = por %p94, %p95
    %p97 = scmp.ne.s32.totalorder %s88, %s89
    %p98 = scmp.eq.s32.totalorder %s15, 0
    %p99 = por %p97, %p98
    %p100 = scmp.ne.s32.totalorder %s88, %s89
    %p101 = scmp.eq.s32.totalorder %s16, 1
    %p102 = por %p100, %p101
    %p104 = scmp.ne.s32.totalorder %s89, %s103
    %p105 = scmp.eq.s32.totalorder %s16, 0
    %p106 = por %p104, %p105
    %s107 = ssub.s32 %s10, %s17
    %p108 = scmp.eq.s32.totalorder %s107, 0
    %s110 = sadd.s32 %s109, 1
    %s111 = scalar_select %p108, %s109, %s110
    %p114 = pneg %p108
    %p115 = scmp.eq.s32.totalorder %s10, 1
    %p116 = por %p114, %p115
    %p117 = scmp.ne.s32.totalorder %s109, %s112
    %p118 = scmp.eq.s32.totalorder %s10, 0
    %p119 = por %p117, %p118
    %p120 = scmp.ne.s32.totalorder %s109, %s112
    %p121 = scmp.eq.s32.totalorder %s15, 1
    %p122 = por %p120, %p121
    %p123 = scmp.ne.s32.totalorder %s112, %s113
    %p124 = scmp.eq.s32.totalorder %s15, 0
    %p125 = por %p123, %p124
    %p126 = scmp.ne.s32.totalorder %s112, %s113
    %p127 = scmp.eq.s32.totalorder %s16, 1
    %p128 = por %p126, %p127
    %p130 = scmp.ne.s32.totalorder %s113, %s129
    %p131 = scmp.eq.s32.totalorder %s16, 0
    %p132 = por %p130, %p131
    %p133 = scmp.le.s32.totalorder 1, %s10
    %p134 = scmp.lt.s32.totalorder %s10, 3
    %p135 = pnand %p133, %p134
    %p136 = pneg %p135
    // Predicated region
    $region9: #{multihead_linformer.1} parent=5 // pred_check
      _
    $region10: #{multihead_linformer.1} parent=5 // pred_check_branch
      %138 = sbr.rel (%p135) target = $region12
    $region11: #{multihead_linformer.1} parent=5 // pred_region
      %s139 = ssub.s32 %s10, 1
      // Predicated region
      $region13: #{multihead_linformer.1} parent=11 // pred_check
        %p140 = pneg %p57
      $region14: #{multihead_linformer.1} parent=11 // pred_check_branch
        %142 = sbr.rel (%p140) target = $region16
      $region15: #{multihead_linformer.1} parent=11 // pred_region
        _
      $region16: #{multihead_linformer.1} parent=11 // pred_fallthru
        _
      // Predicated region
      $region17: #{multihead_linformer.1} parent=11 // pred_check
        %p143 = pneg %p78
      $region18: #{multihead_linformer.1} parent=11 // pred_check_branch
        %145 = sbr.rel (%p143) target = $region20
      $region19: #{multihead_linformer.1} parent=11 // pred_region
        _
      $region20: #{multihead_linformer.1} parent=11 // pred_fallthru
        _
      // Predicated region
      $region21: #{multihead_linformer.1} parent=11 // pred_check
        %p146 = pneg %p99
      $region22: #{multihead_linformer.1} parent=11 // pred_check_branch
        %148 = sbr.rel (%p146) target = $region24
      $region23: #{multihead_linformer.1} parent=11 // pred_region
        _
      $region24: #{multihead_linformer.1} parent=11 // pred_fallthru
        _
    $region12: #{multihead_linformer.1} parent=5 // pred_fallthru
      _
    %p149 = scmp.lt.s32.totalorder %s10, 2
    // Predicated region
    $region25: #{multihead_linformer.1} parent=5 // pred_check
      %p150 = pneg %p149
    $region26: #{multihead_linformer.1} parent=5 // pred_check_branch
      %152 = sbr.rel (%p150) target = $region28
    $region27: #{multihead_linformer.1} parent=5 // pred_region
      // Predicated region
      $region29: #{multihead_linformer.1} parent=27 // pred_check
        %p153 = pneg %p30
      $region30: #{multihead_linformer.1} parent=27 // pred_check_branch
        %155 = sbr.rel (%p153) target = $region32
      $region31: #{multihead_linformer.1} parent=27 // pred_region
        %s156 = smul.u32 8, %s10
        %p157 = scmp.lt.s32.totalorder %s156, 15
        %s158 = scalar_select %p157, %s156, 15
        %s159 = smul.addr %s158, 8
        %s160 = scalar_lea.vmem %s0, %s159
        %s161 = smul.u32 8, %s10
      $region32: #{multihead_linformer.1} parent=27 // pred_fallthru
        _
    $region28: #{multihead_linformer.1} parent=5 // pred_fallthru
      _
    %p162 = scmp.le.s32.totalorder 1, %s10
    %p163 = scmp.lt.s32.totalorder %s10, 3
    %p164 = pnand %p162, %p163
    %p165 = pneg %p164
    // Predicated region
    $region33: #{multihead_linformer.1} parent=5 // pred_check
      _
    $region34: #{multihead_linformer.1} parent=5 // pred_check_branch
      %167 = sbr.rel (%p164) target = $region36
    $region35: #{multihead_linformer.1} parent=5 // pred_region
      %s168 = ssub.s32 %s10, 1
      %s169 = smul.u32 8, %s15
      %p170 = scmp.lt.s32.totalorder %s169, 15
      %s171 = scalar_select %p170, %s169, 15
      %s172 = smul.addr %s171, 8
      %s173 = scalar_lea.vmem %s0, %s172
      %p174 = pneg %p36
      %p175 = pneg %p33
      %p176 = pneg %p57
      %p177 = pneg %p54
      %p178 = pneg %p78
      %p179 = pneg %p75
      %p180 = pneg %p99
      %p181 = pneg %p96
      %p182 = pneg %p125
      %p183 = pneg %p122
      %s184 = smul.u32 8, %s15
      %p185 = scmp.lt.s32.totalorder %s184, 15
      %s186 = scalar_select %p185, %s184, 15
      %s187 = smul.addr %s186, 8
      %s188 = scalar_lea.vmem %s4, %s187
      %s189 = smul.u32 8, %s15
      %p190 = scmp.lt.s32.totalorder %s189, 15
      %s191 = scalar_select %p190, %s189, 15
      %s192 = smul.addr %s191, 8
      %s193 = scalar_lea.vmem %s0, %s192
      %s194 = smul.u32 8, %s15
      %s195 = smul.u32 8, %s15
      %p196 = scmp.lt.s32.totalorder %s195, 15
      %s197 = scalar_select %p196, %s195, 15
      %s198 = smul.addr %s197, 8
      %s199 = scalar_lea.vmem %s4, %s198
      %s200 = smul.u32 8, %s15
      %v201 = vld [vmem:[%s193] sm:$0xff]
      %v202 = vld [vmem:[%s193 + $0x8] sm:$0xff]
      %v203 = vld [vmem:[%s193 + $0x10] sm:$0xff]
      %v204 = vld [vmem:[%s193 + $0x18] sm:$0xff]
      %v205 = vld [vmem:[%s193 + $0x20] sm:$0xff]
      %v206 = vld [vmem:[%s193 + $0x28] sm:$0xff]
      %v207 = vld [vmem:[%s193 + $0x30] sm:$0xff]
      %v208 = vld [vmem:[%s193 + $0x38] sm:$0xff]
      %v209 = vld [vmem:[%s1] sm:$0xff]
      %v210 = vld [vmem:[%s1 + $0x8] sm:$0xff]
      %v211 = vld [vmem:[%s1 + $0x10] sm:$0xff]
      %v212 = vld [vmem:[%s1 + $0x18] sm:$0xff]
      %v213 = vld [vmem:[%s1 + $0x20] sm:$0xff]
      %v214 = vld [vmem:[%s1 + $0x28] sm:$0xff]
      %v215 = vld [vmem:[%s1 + $0x30] sm:$0xff]
      %v216 = vld [vmem:[%s1 + $0x38] sm:$0xff]
      %v217 = vld [vmem:[%s3] sm:$0x1]
      %v218 = vlaneseq
      %v219 = vshrl.u32 %v218, 7
      %v220 = vsub.s32 0, %v219
      %v221 = vrot.slane %v217, %v220
      %vm222 = vcmask 261120
      %v224 = vsel %vm222, %v201, 0
      %v227 = vsel %vm222, %v202, 0
      %v230 = vsel %vm222, %v203, 0
      %v233 = vsel %vm222, %v204, 0
      %v236 = vsel %vm222, %v205, 0
      %v239 = vsel %vm222, %v206, 0
      %v242 = vsel %vm222, %v207, 0
      %v245 = vsel %vm222, %v208, 0
      %v248 = vsel %vm222, %v209, 0
      %v251 = vsel %vm222, %v210, 0
      %v254 = vsel %vm222, %v211, 0
      %v257 = vsel %vm222, %v212, 0
      %v260 = vsel %vm222, %v213, 0
      %v263 = vsel %vm222, %v214, 0
      %v266 = vsel %vm222, %v215, 0
      %v269 = vsel %vm222, %v216, 0
      %271 = vmatprep.subr.mxu0 0.0
      %272 = vmatpush1.xpose.msra.mxu0 %v248
      %273 = vmatprep.subr.mxu0 0.0
      %274 = vmatpush1.xpose.msra.mxu0 %v251
      %275 = vmatprep.subr.mxu0 0.0
      %276 = vmatpush1.xpose.msra.mxu0 %v254
      %277 = vmatprep.subr.mxu0 0.0
      %278 = vmatpush1.xpose.msra.mxu0 %v257
      %279 = vmatprep.subr.mxu0 0.0
      %280 = vmatpush1.xpose.msra.mxu0 %v260
      %281 = vmatprep.subr.mxu0 0.0
      %282 = vmatpush1.xpose.msra.mxu0 %v263
      %283 = vmatprep.subr.mxu0 0.0
      %284 = vmatpush1.xpose.msra.mxu0 %v266
      %285 = vmatprep.subr.mxu0 0.0
      %286 = vmatpush1.xpose.msra.mxu0 %v269
      %287 = vmatprep.subr.mxu0 0.0
      %288 = vmatpush1.xpose.msra.mxu0 0.0
      %289 = vmatprep.subr.mxu0 0.0
      %290 = vmatpush1.xpose.msra.mxu0 0.0
      %291 = vmatprep.subr.mxu0 0.0
      %292 = vmatpush1.xpose.msra.mxu0 0.0
      %293 = vmatprep.subr.mxu0 0.0
      %294 = vmatpush1.xpose.msra.mxu0 0.0
      %295 = vmatprep.subr.mxu0 0.0
      %296 = vmatpush1.xpose.msra.mxu0 0.0
      %297 = vmatprep.subr.mxu0 0.0
      %298 = vmatpush1.xpose.msra.mxu0 0.0
      %299 = vmatprep.subr.mxu0 0.0
      %300 = vmatpush1.xpose.msra.mxu0 0.0
      %301 = vmatprep.subr.mxu0 0.0
      %302 = vmatpush1.xpose.msra.mxu0 0.0
      %303 = vmatprep.subr.mxu0 0.0
      %304 = vmatpush1.xpose.msra.mxu0 0.0
      %305 = vmatprep.subr.mxu0 0.0
      %306 = vmatpush1.xpose.msra.mxu0 0.0
      %307 = vmatprep.subr.mxu0 0.0
      %308 = vmatpush1.xpose.msra.mxu0 0.0
      %309 = vmatprep.subr.mxu0 0.0
      %310 = vmatpush1.xpose.msra.mxu0 0.0
      %311 = vmatprep.subr.mxu0 0.0
      %312 = vmatpush1.xpose.msra.mxu0 0.0
      %313 = vmatprep.subr.mxu0 0.0
      %314 = vmatpush1.xpose.msra.mxu0 0.0
      %315 = vmatprep.subr.mxu0 0.0
      %316 = vmatpush1.xpose.msra.mxu0 0.0
      %317 = vmatprep.subr.mxu0 0.0
      %318 = vmatpush1.xpose.msra.mxu0 0.0
      %319 = vmatprep.subr.mxu0 0.0
      %320 = vmatpush1.xpose.msra.mxu0 0.0
      %321 = vmatprep.subr.mxu0 0.0
      %322 = vmatpush1.xpose.msra.mxu0 0.0
      %323 = vmatprep.subr.mxu0 0.0
      %324 = vmatpush1.xpose.msra.mxu0 0.0
      %325 = vmatprep.subr.mxu0 0.0
      %326 = vmatpush1.xpose.msra.mxu0 0.0
      %327 = vmatprep.subr.mxu0 0.0
      %328 = vmatpush1.xpose.msra.mxu0 0.0
      %329 = vmatprep.subr.mxu0 0.0
      %330 = vmatpush1.xpose.msra.mxu0 0.0
      %331 = vmatprep.subr.mxu0 0.0
      %332 = vmatpush1.xpose.msra.mxu0 0.0
      %333 = vmatprep.subr.mxu0 0.0
      %334 = vmatpush1.xpose.msra.mxu0 0.0
      %335 = vmatprep.mubr.f32.mxu0 0.0
      %336 = vmatmul.mubr.f32.gmra.mrb[0].mxu0 %v224
      %v337 = vpop.f32.mrb[0].mxu0
      %v338 = vadd.f32 %v221, %v337
      %v339 = vpop.f32.mrb[0].mxu0
      %340 = vmatprep.mubr.f32.mxu0 0.0
      %341 = vmatmul.mubr.f32.gmra.mrb[0].mxu0 %v227
      %v342 = vpop.f32.mrb[0].mxu0
      %v343 = vadd.f32 %v221, %v342
      %v344 = vpop.f32.mrb[0].mxu0
      %345 = vmatprep.mubr.f32.mxu0 0.0
      %346 = vmatmul.mubr.f32.gmra.mrb[0].mxu0 %v230
      %v347 = vpop.f32.mrb[0].mxu0
      %v348 = vadd.f32 %v221, %v347
      %v349 = vpop.f32.mrb[0].mxu0
      %350 = vmatprep.mubr.f32.mxu0 0.0
      %351 = vmatmul.mubr.f32.gmra.mrb[0].mxu0 %v233
      %v352 = vpop.f32.mrb[0].mxu0
      %v353 = vadd.f32 %v221, %v352
      %v354 = vpop.f32.mrb[0].mxu0
      %355 = vmatprep.mubr.f32.mxu0 0.0
      %356 = vmatmul.mubr.f32.gmra.mrb[0].mxu0 %v236
      %v357 = vpop.f32.mrb[0].mxu0
      %v358 = vadd.f32 %v221, %v357
      %v359 = vpop.f32.mrb[0].mxu0
      %360 = vmatprep.mubr.f32.mxu0 0.0
      %361 = vmatmul.mubr.f32.gmra.mrb[0].mxu0 %v239
      %v362 = vpop.f32.mrb[0].mxu0
      %v363 = vadd.f32 %v221, %v362
      %v364 = vpop.f32.mrb[0].mxu0
      %365 = vmatprep.mubr.f32.mxu0 0.0
      %366 = vmatmul.mubr.f32.gmra.mrb[0].mxu0 %v242
      %v367 = vpop.f32.mrb[0].mxu0
      %v368 = vadd.f32 %v221, %v367
      %v369 = vpop.f32.mrb[0].mxu0
      %370 = vmatprep.mubr.f32.mxu0 0.0
      %371 = vmatmul.mubr.f32.gmra.mrb[0].mxu0 %v245
      %v372 = vpop.f32.mrb[0].mxu0
      %v373 = vadd.f32 %v221, %v372
      %v374 = vpop.f32.mrb[0].mxu0
      %375 = vdwg.mxu0
      %v376 = vld [vmem:[%s1 + $0x40] sm:$0xff]
      %v377 = vld [vmem:[%s1 + $0x48] sm:$0xff]
      %v378 = vld [vmem:[%s1 + $0x50] sm:$0xff]
      %v379 = vld [vmem:[%s1 + $0x58] sm:$0xff]
      %v380 = vld [vmem:[%s1 + $0x60] sm:$0xff]
      %v381 = vld [vmem:[%s1 + $0x68] sm:$0xff]
      %v382 = vld [vmem:[%s1 + $0x70] sm:$0xff]
      %v383 = vld [vmem:[%s1 + $0x78] sm:$0xff]
      %v385 = vsel %vm222, %v376, 0
      %v388 = vsel %vm222, %v377, 0
      %v391 = vsel %vm222, %v378, 0
      %v394 = vsel %vm222, %v379, 0
      %v397 = vsel %vm222, %v380, 0
      %v400 = vsel %vm222, %v381, 0
      %v403 = vsel %vm222, %v382, 0
      %v406 = vsel %vm222, %v383, 0
      %408 = vmatprep.subr.mxu0 0.0
      %409 = vmatpush1.xpose.msra.mxu0 %v385
      %410 = vmatprep.subr.mxu0 0.0
      %411 = vmatpush1.xpose.msra.mxu0 %v388
      %412 = vmatprep.subr.mxu0 0.0
      %413 = vmatpush1.xpose.msra.mxu0 %v391
      %414 = vmatprep.subr.mxu0 0.0
      %415 = vmatpush1.xpose.msra.mxu0 %v394
      %416 = vmatprep.subr.mxu0 0.0
      %417 = vmatpush1.xpose.msra.mxu0 %v397
      %418 = vmatprep.subr.mxu0 0.0
      %419 = vmatpush1.xpose.msra.mxu0 %v400
      %420 = vmatprep.subr.mxu0 0.0
      %421 = vmatpush1.xpose.msra.mxu0 %v403
      %422 = vmatprep.subr.mxu0 0.0
      %423 = vmatpush1.xpose.msra.mxu0 %v406
      %424 = vmatprep.subr.mxu0 0.0
      %425 = vmatpush1.xpose.msra.mxu0 0.0
      %426 = vmatprep.subr.mxu0 0.0
      %427 = vmatpush1.xpose.msra.mxu0 0.0
      %428 = vmatprep.subr.mxu0 0.0
      %429 = vmatpush1.xpose.msra.mxu0 0.0
      %430 = vmatprep.subr.mxu0 0.0
      %431 = vmatpush1.xpose.msra.mxu0 0.0
      %432 = vmatprep.subr.mxu0 0.0
      %433 = vmatpush1.xpose.msra.mxu0 0.0
      %434 = vmatprep.subr.mxu0 0.0
      %435 = vmatpush1.xpose.msra.mxu0 0.0
      %436 = vmatprep.subr.mxu0 0.0
      %437 = vmatpush1.xpose.msra.mxu0 0.0
      %438 = vmatprep.subr.mxu0 0.0
      %439 = vmatpush1.xpose.msra.mxu0 0.0
      %440 = vmatprep.subr.mxu0 0.0
      %441 = vmatpush1.xpose.msra.mxu0 0.0
      %442 = vmatprep.subr.mxu0 0.0
      %443 = vmatpush1.xpose.msra.mxu0 0.0
      %444 = vmatprep.subr.mxu0 0.0
      %445 = vmatpush1.xpose.msra.mxu0 0.0
      %446 = vmatprep.subr.mxu0 0.0
      %447 = vmatpush1.xpose.msra.mxu0 0.0
      %448 = vmatprep.subr.mxu0 0.0
      %449 = vmatpush1.xpose.msra.mxu0 0.0
      %450 = vmatprep.subr.mxu0 0.0
      %451 = vmatpush1.xpose.msra.mxu0 0.0
      %452 = vmatprep.subr.mxu0 0.0
      %453 = vmatpush1.xpose.msra.mxu0 0.0
      %454 = vmatprep.subr.mxu0 0.0
      %455 = vmatpush1.xpose.msra.mxu0 0.0
      %456 = vmatprep.subr.mxu0 0.0
      %457 = vmatpush1.xpose.msra.mxu0 0.0
      %458 = vmatprep.subr.mxu0 0.0
      %459 = vmatpush1.xpose.msra.mxu0 0.0
      %460 = vmatprep.subr.mxu0 0.0
      %461 = vmatpush1.xpose.msra.mxu0 0.0
      %462 = vmatprep.subr.mxu0 0.0
      %463 = vmatpush1.xpose.msra.mxu0 0.0
      %464 = vmatprep.subr.mxu0 0.0
      %465 = vmatpush1.xpose.msra.mxu0 0.0
      %466 = vmatprep.subr.mxu0 0.0
      %467 = vmatpush1.xpose.msra.mxu0 0.0
      %468 = vmatprep.subr.mxu0 0.0
      %469 = vmatpush1.xpose.msra.mxu0 0.0
      %470 = vmatprep.subr.mxu0 0.0
      %471 = vmatpush1.xpose.msra.mxu0 0.0
      %472 = vmatprep.mubr.f32.mxu0 0.0
      %473 = vmatmul.mubr.f32.gmra.mrb[0].mxu0 %v224
      %v474 = vpop.f32.mrb[0].mxu0
      %v475 = vadd.f32 0.0, %v474
      %v476 = vpop.f32.mrb[0].mxu0
      %477 = vmatprep.mubr.f32.mxu0 0.0
      %478 = vmatmul.mubr.f32.gmra.mrb[0].mxu0 %v227
      %v479 = vpop.f32.mrb[0].mxu0
      %v480 = vadd.f32 0.0, %v479
      %v481 = vpop.f32.mrb[0].mxu0
      %482 = vmatprep.mubr.f32.mxu0 0.0
      %483 = vmatmul.mubr.f32.gmra.mrb[0].mxu0 %v230
      %v484 = vpop.f32.mrb[0].mxu0
      %v485 = vadd.f32 0.0, %v484
      %v486 = vpop.f32.mrb[0].mxu0
      %487 = vmatprep.mubr.f32.mxu0 0.0
      %488 = vmatmul.mubr.f32.gmra.mrb[0].mxu0 %v233
      %v489 = vpop.f32.mrb[0].mxu0
      %v490 = vadd.f32 0.0, %v489
      %v491 = vpop.f32.mrb[0].mxu0
      %492 = vmatprep.mubr.f32.mxu0 0.0
      %493 = vmatmul.mubr.f32.gmra.mrb[0].mxu0 %v236
      %v494 = vpop.f32.mrb[0].mxu0
      %v495 = vadd.f32 0.0, %v494
      %v496 = vpop.f32.mrb[0].mxu0
      %497 = vmatprep.mubr.f32.mxu0 0.0
      %498 = vmatmul.mubr.f32.gmra.mrb[0].mxu0 %v239
      %v499 = vpop.f32.mrb[0].mxu0
      %v500 = vadd.f32 0.0, %v499
      %v501 = vpop.f32.mrb[0].mxu0
      %502 = vmatprep.mubr.f32.mxu0 0.0
      %503 = vmatmul.mubr.f32.gmra.mrb[0].mxu0 %v242
      %v504 = vpop.f32.mrb[0].mxu0
      %v505 = vadd.f32 0.0, %v504
      %v506 = vpop.f32.mrb[0].mxu0
      %507 = vmatprep.mubr.f32.mxu0 0.0
      %508 = vmatmul.mubr.f32.gmra.mrb[0].mxu0 %v245
      %v509 = vpop.f32.mrb[0].mxu0
      %v510 = vadd.f32 0.0, %v509
      %v511 = vpop.f32.mrb[0].mxu0
      %512 = vdwg.mxu0
      %v513 = vld [vmem:[%s1 + $0x80] sm:$0xff]
      %v514 = vld [vmem:[%s1 + $0x88] sm:$0xff]
      %v515 = vld [vmem:[%s1 + $0x90] sm:$0xff]
      %v516 = vld [vmem:[%s1 + $0x98] sm:$0xff]
      %v517 = vld [vmem:[%s1 + $0xa0] sm:$0xff]
      %v518 = vld [vmem:[%s1 + $0xa8] sm:$0xff]
      %v519 = vld [vmem:[%s1 + $0xb0] sm:$0xff]
      %v520 = vld [vmem:[%s1 + $0xb8] sm:$0xff]
      %v522 = vsel %vm222, %v513, 0
      %v525 = vsel %vm222, %v514, 0
      %v528 = vsel %vm222, %v515, 0
      %v531 = vsel %vm222, %v516, 0
      %v534 = vsel %vm222, %v517, 0
      %v537 = vsel %vm222, %v518, 0
      %v540 = vsel %vm222, %v519, 0
      %v543 = vsel %vm222, %v520, 0
      %545 = vmatprep.subr.mxu0 0.0
      %546 = vmatpush1.xpose.msra.mxu0 %v522
      %547 = vmatprep.subr.mxu0 0.0
      %548 = vmatpush1.xpose.msra.mxu0 %v525
      %549 = vmatprep.subr.mxu0 0.0
      %550 = vmatpush1.xpose.msra.mxu0 %v528
      %551 = vmatprep.subr.mxu0 0.0
      %552 = vmatpush1.xpose.msra.mxu0 %v531
      %553 = vmatprep.subr.mxu0 0.0
      %554 = vmatpush1.xpose.msra.mxu0 %v534
      %555 = vmatprep.subr.mxu0 0.0
      %556 = vmatpush1.xpose.msra.mxu0 %v537
      %557 = vmatprep.subr.mxu0 0.0
      %558 = vmatpush1.xpose.msra.mxu0 %v540
      %559 = vmatprep.subr.mxu0 0.0
      %560 = vmatpush1.xpose.msra.mxu0 %v543
      %561 = vmatprep.subr.mxu0 0.0
      %562 = vmatpush1.xpose.msra.mxu0 0.0
      %563 = vmatprep.subr.mxu0 0.0
      %564 = vmatpush1.xpose.msra.mxu0 0.0
      %565 = vmatprep.subr.mxu0 0.0
      %566 = vmatpush1.xpose.msra.mxu0 0.0
      %567 = vmatprep.subr.mxu0 0.0
      %568 = vmatpush1.xpose.msra.mxu0 0.0
      %569 = vmatprep.subr.mxu0 0.0
      %570 = vmatpush1.xpose.msra.mxu0 0.0
      %571 = vmatprep.subr.mxu0 0.0
      %572 = vmatpush1.xpose.msra.mxu0 0.0
      %573 = vmatprep.subr.mxu0 0.0
      %574 = vmatpush1.xpose.msra.mxu0 0.0
      %575 = vmatprep.subr.mxu0 0.0
      %576 = vmatpush1.xpose.msra.mxu0 0.0
      %577 = vmatprep.subr.mxu0 0.0
      %578 = vmatpush1.xpose.msra.mxu0 0.0
      %579 = vmatprep.subr.mxu0 0.0
      %580 = vmatpush1.xpose.msra.mxu0 0.0
      %581 = vmatprep.subr.mxu0 0.0
      %582 = vmatpush1.xpose.msra.mxu0 0.0
      %583 = vmatprep.subr.mxu0 0.0
      %584 = vmatpush1.xpose.msra.mxu0 0.0
      %585 = vmatprep.subr.mxu0 0.0
      %586 = vmatpush1.xpose.msra.mxu0 0.0
      %587 = vmatprep.subr.mxu0 0.0
      %588 = vmatpush1.xpose.msra.mxu0 0.0
      %589 = vmatprep.subr.mxu0 0.0
      %590 = vmatpush1.xpose.msra.mxu0 0.0
      %591 = vmatprep.subr.mxu0 0.0
      %592 = vmatpush1.xpose.msra.mxu0 0.0
      %593 = vmatprep.subr.mxu0 0.0
      %594 = vmatpush1.xpose.msra.mxu0 0.0
      %595 = vmatprep.subr.mxu0 0.0
      %596 = vmatpush1.xpose.msra.mxu0 0.0
      %597 = vmatprep.subr.mxu0 0.0
      %598 = vmatpush1.xpose.msra.mxu0 0.0
      %599 = vmatprep.subr.mxu0 0.0
      %600 = vmatpush1.xpose.msra.mxu0 0.0
      %601 = vmatprep.subr.mxu0 0.0
      %602 = vmatpush1.xpose.msra.mxu0 0.0
      %603 = vmatprep.subr.mxu0 0.0
      %604 = vmatpush1.xpose.msra.mxu0 0.0
      %605 = vmatprep.subr.mxu0 0.0
      %606 = vmatpush1.xpose.msra.mxu0 0.0
      %607 = vmatprep.subr.mxu0 0.0
      %608 = vmatpush1.xpose.msra.mxu0 0.0
      %609 = vmatprep.mubr.f32.mxu0 0.0
      %610 = vmatmul.mubr.f32.gmra.mrb[0].mxu0 %v224
      %v611 = vpop.f32.mrb[0].mxu0
      %v612 = vadd.f32 0.0, %v611
      %v613 = vpop.f32.mrb[0].mxu0
      %614 = vmatprep.mubr.f32.mxu0 0.0
      %615 = vmatmul.mubr.f32.gmra.mrb[0].mxu0 %v227
      %v616 = vpop.f32.mrb[0].mxu0
      %v617 = vadd.f32 0.0, %v616
      %v618 = vpop.f32.mrb[0].mxu0
      %619 = vmatprep.mubr.f32.mxu0 0.0
      %620 = vmatmul.mubr.f32.gmra.mrb[0].mxu0 %v230
      %v621 = vpop.f32.mrb[0].mxu0
      %v622 = vadd.f32 0.0, %v621
      %v623 = vpop.f32.mrb[0].mxu0
      %624 = vmatprep.mubr.f32.mxu0 0.0
      %625 = vmatmul.mubr.f32.gmra.mrb[0].mxu0 %v233
      %v626 = vpop.f32.mrb[0].mxu0
      %v627 = vadd.f32 0.0, %v626
      %v628 = vpop.f32.mrb[0].mxu0
      %629 = vmatprep.mubr.f32.mxu0 0.0
      %630 = vmatmul.mubr.f32.gmra.mrb[0].mxu0 %v236
      %v631 = vpop.f32.mrb[0].mxu0
      %v632 = vadd.f32 0.0, %v631
      %v633 = vpop.f32.mrb[0].mxu0
      %634 = vmatprep.mubr.f32.mxu0 0.0
      %635 = vmatmul.mubr.f32.gmra.mrb[0].mxu0 %v239
      %v636 = vpop.f32.mrb[0].mxu0
      %v637 = vadd.f32 0.0, %v636
      %v638 = vpop.f32.mrb[0].mxu0
      %639 = vmatprep.mubr.f32.mxu0 0.0
      %640 = vmatmul.mubr.f32.gmra.mrb[0].mxu0 %v242
      %v641 = vpop.f32.mrb[0].mxu0
      %v642 = vadd.f32 0.0, %v641
      %v643 = vpop.f32.mrb[0].mxu0
      %644 = vmatprep.mubr.f32.mxu0 0.0
      %645 = vmatmul.mubr.f32.gmra.mrb[0].mxu0 %v245
      %v646 = vpop.f32.mrb[0].mxu0
      %v647 = vadd.f32 0.0, %v646
      %v648 = vpop.f32.mrb[0].mxu0
      %649 = vdwg.mxu0
      %v650 = vld [vmem:[%s3 + $0x8] sm:$0xff]
      %v651 = vld [vmem:[%s3 + $0x10] sm:$0xff]
      %v652 = vld [vmem:[%s3 + $0x18] sm:$0xff]
      %v653 = vld [vmem:[%s3 + $0x20] sm:$0xff]
      %v654 = vld [vmem:[%s3 + $0x28] sm:$0xff]
      %v655 = vld [vmem:[%s3 + $0x30] sm:$0xff]
      %v656 = vld [vmem:[%s3 + $0x38] sm:$0xff]
      %v657 = vld [vmem:[%s3 + $0x40] sm:$0xff]
      %v658 = vld [vmem:[%s3 + $0x48] sm:$0xff]
      %v659 = vld [vmem:[%s3 + $0x50] sm:$0xff]
      %v660 = vld [vmem:[%s3 + $0x58] sm:$0xff]
      %v661 = vld [vmem:[%s3 + $0x60] sm:$0xff]
      %v662 = vld [vmem:[%s3 + $0x68] sm:$0xff]
      %v663 = vld [vmem:[%s3 + $0x70] sm:$0xff]
      %v664 = vld [vmem:[%s3 + $0x78] sm:$0xff]
      %v665 = vld [vmem:[%s3 + $0x80] sm:$0xff]
      %v666 = vld [vmem:[%s2] sm:$0xff]
      %v667 = vld [vmem:[%s2 + $0x8] sm:$0xff]
      %v668 = vld [vmem:[%s2 + $0x10] sm:$0xff]
      %v669 = vld [vmem:[%s2 + $0x18] sm:$0xff]
      %v670 = vld [vmem:[%s2 + $0x20] sm:$0xff]
      %v671 = vld [vmem:[%s2 + $0x28] sm:$0xff]
      %v672 = vld [vmem:[%s2 + $0x30] sm:$0xff]
      %v673 = vld [vmem:[%s2 + $0x38] sm:$0xff]
      %v674 = vld [vmem:[%s2 + $0x40] sm:$0xff]
      %v675 = vld [vmem:[%s2 + $0x48] sm:$0xff]
      %v676 = vld [vmem:[%s2 + $0x50] sm:$0xff]
      %v677 = vld [vmem:[%s2 + $0x58] sm:$0xff]
      %v678 = vld [vmem:[%s2 + $0x60] sm:$0xff]
      %v679 = vld [vmem:[%s2 + $0x68] sm:$0xff]
      %v680 = vld [vmem:[%s2 + $0x70] sm:$0xff]
      %v681 = vld [vmem:[%s2 + $0x78] sm:$0xff]
      %vm682 = vcmask 523264
      %v684 = vsel %vm682, %v666, 0
      %v687 = vsel %vm682, %v667, 0
      %v690 = vsel %vm682, %v668, 0
      %v693 = vsel %vm682, %v669, 0
      %v696 = vsel %vm682, %v670, 0
      %v699 = vsel %vm682, %v671, 0
      %v702 = vsel %vm682, %v672, 0
      %v705 = vsel %vm682, %v673, 0
      %v708 = vsel %vm682, %v674, 0
      %v711 = vsel %vm682, %v675, 0
      %v714 = vsel %vm682, %v676, 0
      %v717 = vsel %vm682, %v677, 0
      %v720 = vsel %vm682, %v678, 0
      %v723 = vsel %vm682, %v679, 0
      %v726 = vsel %vm682, %v680, 0
      %v729 = vsel %vm682, %v681, 0
      %731 = vmatprep.subr.mxu0 0.0
      %732 = vmatpush1.msra.mxu0 %v475
      %733 = vmatprep.subr.mxu0 0.0
      %734 = vmatpush1.msra.mxu0 %v480
      %735 = vmatprep.subr.mxu0 0.0
      %736 = vmatpush1.msra.mxu0 %v485
      %737 = vmatprep.subr.mxu0 0.0
      %738 = vmatpush1.msra.mxu0 %v490
      %739 = vmatprep.subr.mxu0 0.0
      %740 = vmatpush1.msra.mxu0 %v495
      %741 = vmatprep.subr.mxu0 0.0
      %742 = vmatpush1.msra.mxu0 %v500
      %743 = vmatprep.subr.mxu0 0.0
      %744 = vmatpush1.msra.mxu0 %v505
      %745 = vmatprep.subr.mxu0 0.0
      %746 = vmatpush1.msra.mxu0 %v510
      %747 = vmatprep.subr.mxu0 0.0
      %748 = vmatpush1.msra.mxu0 0.0
      %749 = vmatprep.subr.mxu0 0.0
      %750 = vmatpush1.msra.mxu0 0.0
      %751 = vmatprep.subr.mxu0 0.0
      %752 = vmatpush1.msra.mxu0 0.0
      %753 = vmatprep.subr.mxu0 0.0
      %754 = vmatpush1.msra.mxu0 0.0
      %755 = vmatprep.subr.mxu0 0.0
      %756 = vmatpush1.msra.mxu0 0.0
      %757 = vmatprep.subr.mxu0 0.0
      %758 = vmatpush1.msra.mxu0 0.0
      %759 = vmatprep.subr.mxu0 0.0
      %760 = vmatpush1.msra.mxu0 0.0
      %761 = vmatprep.subr.mxu0 0.0
      %762 = vmatpush1.msra.mxu0 0.0
      %763 = vmatprep.subr.mxu0 0.0
      %764 = vmatpush1.msra.mxu0 0.0
      %765 = vmatprep.subr.mxu0 0.0
      %766 = vmatpush1.msra.mxu0 0.0
      %767 = vmatprep.subr.mxu0 0.0
      %768 = vmatpush1.msra.mxu0 0.0
      %769 = vmatprep.subr.mxu0 0.0
      %770 = vmatpush1.msra.mxu0 0.0
      %771 = vmatprep.subr.mxu0 0.0
      %772 = vmatpush1.msra.mxu0 0.0
      %773 = vmatprep.subr.mxu0 0.0
      %774 = vmatpush1.msra.mxu0 0.0
      %775 = vmatprep.subr.mxu0 0.0
      %776 = vmatpush1.msra.mxu0 0.0
      %777 = vmatprep.subr.mxu0 0.0
      %778 = vmatpush1.msra.mxu0 0.0
      %779 = vmatprep.subr.mxu0 0.0
      %780 = vmatpush1.msra.mxu0 0.0
      %781 = vmatprep.subr.mxu0 0.0
      %782 = vmatpush1.msra.mxu0 0.0
      %783 = vmatprep.subr.mxu0 0.0
      %784 = vmatpush1.msra.mxu0 0.0
      %785 = vmatprep.subr.mxu0 0.0
      %786 = vmatpush1.msra.mxu0 0.0
      %787 = vmatprep.subr.mxu0 0.0
      %788 = vmatpush1.msra.mxu0 0.0
      %789 = vmatprep.subr.mxu0 0.0
      %790 = vmatpush1.msra.mxu0 0.0
      %791 = vmatprep.subr.mxu0 0.0
      %792 = vmatpush1.msra.mxu0 0.0
      %793 = vmatprep.subr.mxu0 0.0
      %794 = vmatpush1.msra.mxu0 0.0
      %795 = vmatprep.mubr.f32.mxu0 0.0
      %796 = vmatmul.mubr.f32.gmra.mrb[0].mxu0 %v684
      %v797 = vpop.f32.mrb[0].mxu0
      %v798 = vadd.f32 0.0, %v797
      %v799 = vpop.f32.mrb[0].mxu0
      %800 = vmatprep.mubr.f32.mxu0 0.0
      %801 = vmatmul.mubr.f32.gmra.mrb[0].mxu0 %v687
      %v802 = vpop.f32.mrb[0].mxu0
      %v803 = vadd.f32 0.0, %v802
      %v804 = vpop.f32.mrb[0].mxu0
      %805 = vmatprep.mubr.f32.mxu0 0.0
      %806 = vmatmul.mubr.f32.gmra.mrb[0].mxu0 %v690
      %v807 = vpop.f32.mrb[0].mxu0
      %v808 = vadd.f32 0.0, %v807
      %v809 = vpop.f32.mrb[0].mxu0
      %810 = vmatprep.mubr.f32.mxu0 0.0
      %811 = vmatmul.mubr.f32.gmra.mrb[0].mxu0 %v693
      %v812 = vpop.f32.mrb[0].mxu0
      %v813 = vadd.f32 0.0, %v812
      %v814 = vpop.f32.mrb[0].mxu0
      %815 = vmatprep.mubr.f32.mxu0 0.0
      %816 = vmatmul.mubr.f32.gmra.mrb[0].mxu0 %v696
      %v817 = vpop.f32.mrb[0].mxu0
      %v818 = vadd.f32 0.0, %v817
      %v819 = vpop.f32.mrb[0].mxu0
      %820 = vmatprep.mubr.f32.mxu0 0.0
      %821 = vmatmul.mubr.f32.gmra.mrb[0].mxu0 %v699
      %v822 = vpop.f32.mrb[0].mxu0
      %v823 = vadd.f32 0.0, %v822
      %v824 = vpop.f32.mrb[0].mxu0
      %825 = vmatprep.mubr.f32.mxu0 0.0
      %826 = vmatmul.mubr.f32.gmra.mrb[0].mxu0 %v702
      %v827 = vpop.f32.mrb[0].mxu0
      %v828 = vadd.f32 0.0, %v827
      %v829 = vpop.f32.mrb[0].mxu0
      %830 = vmatprep.mubr.f32.mxu0 0.0
      %831 = vmatmul.mubr.f32.gmra.mrb[0].mxu0 %v705
      %v832 = vpop.f32.mrb[0].mxu0
      %v833 = vadd.f32 0.0, %v832
      %v834 = vpop.f32.mrb[0].mxu0
      %835 = vmatprep.mubr.f32.mxu0 0.0
      %836 = vmatmul.mubr.f32.gmra.mrb[0].mxu0 %v708
      %v837 = vpop.f32.mrb[0].mxu0
      %v838 = vadd.f32 0.0, %v837
      %v839 = vpop.f32.mrb[0].mxu0
      %840 = vmatprep.mubr.f32.mxu0 0.0
      %841 = vmatmul.mubr.f32.gmra.mrb[0].mxu0 %v711
      %v842 = vpop.f32.mrb[0].mxu0
      %v843 = vadd.f32 0.0, %v842
      %v844 = vpop.f32.mrb[0].mxu0
      %845 = vmatprep.mubr.f32.mxu0 0.0
      %846 = vmatmul.mubr.f32.gmra.mrb[0].mxu0 %v714
      %v847 = vpop.f32.mrb[0].mxu0
      %v848 = vadd.f32 0.0, %v847
      %v849 = vpop.f32.mrb[0].mxu0
      %850 = vmatprep.mubr.f32.mxu0 0.0
      %851 = vmatmul.mubr.f32.gmra.mrb[0].mxu0 %v717
      %v852 = vpop.f32.mrb[0].mxu0
      %v853 = vadd.f32 0.0, %v852
      %v854 = vpop.f32.mrb[0].mxu0
      %855 = vmatprep.mubr.f32.mxu0 0.0
      %856 = vmatmul.mubr.f32.gmra.mrb[0].mxu0 %v720
      %v857 = vpop.f32.mrb[0].mxu0
      %v858 = vadd.f32 0.0, %v857
      %v859 = vpop.f32.mrb[0].mxu0
      %860 = vmatprep.mubr.f32.mxu0 0.0
      %861 = vmatmul.mubr.f32.gmra.mrb[0].mxu0 %v723
      %v862 = vpop.f32.mrb[0].mxu0
      %v863 = vadd.f32 0.0, %v862
      %v864 = vpop.f32.mrb[0].mxu0
      %865 = vmatprep.mubr.f32.mxu0 0.0
      %866 = vmatmul.mubr.f32.gmra.mrb[0].mxu0 %v726
      %v867 = vpop.f32.mrb[0].mxu0
      %v868 = vadd.f32 0.0, %v867
      %v869 = vpop.f32.mrb[0].mxu0
      %870 = vmatprep.mubr.f32.mxu0 0.0
      %871 = vmatmul.mubr.f32.gmra.mrb[0].mxu0 %v729
      %v872 = vpop.f32.mrb[0].mxu0
      %v873 = vadd.f32 0.0, %v872
      %v874 = vpop.f32.mrb[0].mxu0
      %875 = vdwg.mxu0
      %v876 = vmul.f32 %v798, %v650
      %v877 = vmul.f32 %v803, %v651
      %v878 = vmul.f32 %v808, %v652
      %v879 = vmul.f32 %v813, %v653
      %v880 = vmul.f32 %v818, %v654
      %v881 = vmul.f32 %v823, %v655
      %v882 = vmul.f32 %v828, %v656
      %v883 = vmul.f32 %v833, %v657
      %v884 = vmul.f32 %v838, %v658
      %v885 = vmul.f32 %v843, %v659
      %v886 = vmul.f32 %v848, %v660
      %v887 = vmul.f32 %v853, %v661
      %v888 = vmul.f32 %v858, %v662
      %v889 = vmul.f32 %v863, %v663
      %v890 = vmul.f32 %v868, %v664
      %v891 = vmul.f32 %v873, %v665
      %v892 = vld [vmem:[%s3 + $0x88] sm:$0xff]
      %v893 = vld [vmem:[%s3 + $0x90] sm:$0xff]
      %v894 = vld [vmem:[%s3 + $0x98] sm:$0xff]
      %v895 = vld [vmem:[%s3 + $0xa0] sm:$0xff]
      %v896 = vld [vmem:[%s3 + $0xa8] sm:$0xff]
      %v897 = vld [vmem:[%s3 + $0xb0] sm:$0xff]
      %v898 = vld [vmem:[%s3 + $0xb8] sm:$0xff]
      %v899 = vld [vmem:[%s3 + $0xc0] sm:$0xff]
      %v900 = vld [vmem:[%s3 + $0xc8] sm:$0xff]
      %v901 = vld [vmem:[%s3 + $0xd0] sm:$0xff]
      %v902 = vld [vmem:[%s3 + $0xd8] sm:$0xff]
      %v903 = vld [vmem:[%s3 + $0xe0] sm:$0xff]
      %v904 = vld [vmem:[%s3 + $0xe8] sm:$0xff]
      %v905 = vld [vmem:[%s3 + $0xf0] sm:$0xff]
      %v906 = vld [vmem:[%s3 + $0xf8] sm:$0xff]
      %v907 = vld [vmem:[%s3 + $0x100] sm:$0xff]
      %v908 = vadd.f32 %v876, %v892
      %v909 = vadd.f32 %v877, %v893
      %v910 = vadd.f32 %v878, %v894
      %v911 = vadd.f32 %v879, %v895
      %v912 = vadd.f32 %v880, %v896
      %v913 = vadd.f32 %v881, %v897
      %v914 = vadd.f32 %v882, %v898
      %v915 = vadd.f32 %v883, %v899
      %v916 = vadd.f32 %v884, %v900
      %v917 = vadd.f32 %v885, %v901
      %v918 = vadd.f32 %v886, %v902
      %v919 = vadd.f32 %v887, %v903
      %v920 = vadd.f32 %v888, %v904
      %v921 = vadd.f32 %v889, %v905
      %v922 = vadd.f32 %v890, %v906
      %v923 = vadd.f32 %v891, %v907
      %v924 = vld [vmem:[%s2 + $0x80] sm:$0xff]
      %v925 = vld [vmem:[%s2 + $0x88] sm:$0xff]
      %v926 = vld [vmem:[%s2 + $0x90] sm:$0xff]
      %v927 = vld [vmem:[%s2 + $0x98] sm:$0xff]
      %v928 = vld [vmem:[%s2 + $0xa0] sm:$0xff]
      %v929 = vld [vmem:[%s2 + $0xa8] sm:$0xff]
      %v930 = vld [vmem:[%s2 + $0xb0] sm:$0xff]
      %v931 = vld [vmem:[%s2 + $0xb8] sm:$0xff]
      %v932 = vld [vmem:[%s2 + $0xc0] sm:$0xff]
      %v933 = vld [vmem:[%s2 + $0xc8] sm:$0xff]
      %v934 = vld [vmem:[%s2 + $0xd0] sm:$0xff]
      %v935 = vld [vmem:[%s2 + $0xd8] sm:$0xff]
      %v936 = vld [vmem:[%s2 + $0xe0] sm:$0xff]
      %v937 = vld [vmem:[%s2 + $0xe8] sm:$0xff]
      %v938 = vld [vmem:[%s2 + $0xf0] sm:$0xff]
      %v939 = vld [vmem:[%s2 + $0xf8] sm:$0xff]
      %v941 = vsel %vm682, %v924, 0
      %v944 = vsel %vm682, %v925, 0
      %v947 = vsel %vm682, %v926, 0
      %v950 = vsel %vm682, %v927, 0
      %v953 = vsel %vm682, %v928, 0
      %v956 = vsel %vm682, %v929, 0
      %v959 = vsel %vm682, %v930, 0
      %v962 = vsel %vm682, %v931, 0
      %v965 = vsel %vm682, %v932, 0
      %v968 = vsel %vm682, %v933, 0
      %v971 = vsel %vm682, %v934, 0
      %v974 = vsel %vm682, %v935, 0
      %v977 = vsel %vm682, %v936, 0
      %v980 = vsel %vm682, %v937, 0
      %v983 = vsel %vm682, %v938, 0
      %v986 = vsel %vm682, %v939, 0
      %988 = vmatprep.subr.mxu0 0.0
      %989 = vmatpush1.msra.mxu0 %v612
      %990 = vmatprep.subr.mxu0 0.0
      %991 = vmatpush1.msra.mxu0 %v617
      %992 = vmatprep.subr.mxu0 0.0
      %993 = vmatpush1.msra.mxu0 %v622
      %994 = vmatprep.subr.mxu0 0.0
      %995 = vmatpush1.msra.mxu0 %v627
      %996 = vmatprep.subr.mxu0 0.0
      %997 = vmatpush1.msra.mxu0 %v632
      %998 = vmatprep.subr.mxu0 0.0
      %999 = vmatpush1.msra.mxu0 %v637
      %1000 = vmatprep.subr.mxu0 0.0
      %1001 = vmatpush1.msra.mxu0 %v642
      %1002 = vmatprep.subr.mxu0 0.0
      %1003 = vmatpush1.msra.mxu0 %v647
      %1004 = vmatprep.subr.mxu0 0.0
      %1005 = vmatpush1.msra.mxu0 0.0
      %1006 = vmatprep.subr.mxu0 0.0
      %1007 = vmatpush1.msra.mxu0 0.0
      %1008 = vmatprep.subr.mxu0 0.0
      %1009 = vmatpush1.msra.mxu0 0.0
      %1010 = vmatprep.subr.mxu0 0.0
      %1011 = vmatpush1.msra.mxu0 0.0
      %1012 = vmatprep.subr.mxu0 0.0
      %1013 = vmatpush1.msra.mxu0 0.0
      %1014 = vmatprep.subr.mxu0 0.0
      %1015 = vmatpush1.msra.mxu0 0.0
      %1016 = vmatprep.subr.mxu0 0.0
      %1017 = vmatpush1.msra.mxu0 0.0
      %1018 = vmatprep.subr.mxu0 0.0
      %1019 = vmatpush1.msra.mxu0 0.0
      %1020 = vmatprep.subr.mxu0 0.0
      %1021 = vmatpush1.msra.mxu0 0.0
      %1022 = vmatprep.subr.mxu0 0.0
      %1023 = vmatpush1.msra.mxu0 0.0
      %1024 = vmatprep.subr.mxu0 0.0
      %1025 = vmatpush1.msra.mxu0 0.0
      %1026 = vmatprep.subr.mxu0 0.0
      %1027 = vmatpush1.msra.mxu0 0.0
      %1028 = vmatprep.subr.mxu0 0.0
      %1029 = vmatpush1.msra.mxu0 0.0
      %1030 = vmatprep.subr.mxu0 0.0
      %1031 = vmatpush1.msra.mxu0 0.0
      %1032 = vmatprep.subr.mxu0 0.0
      %1033 = vmatpush1.msra.mxu0 0.0
      %1034 = vmatprep.subr.mxu0 0.0
      %1035 = vmatpush1.msra.mxu0 0.0
      %1036 = vmatprep.subr.mxu0 0.0
      %1037 = vmatpush1.msra.mxu0 0.0
      %1038 = vmatprep.subr.mxu0 0.0
      %1039 = vmatpush1.msra.mxu0 0.0
      %1040 = vmatprep.subr.mxu0 0.0
      %1041 = vmatpush1.msra.mxu0 0.0
      %1042 = vmatprep.subr.mxu0 0.0
      %1043 = vmatpush1.msra.mxu0 0.0
      %1044 = vmatprep.subr.mxu0 0.0
      %1045 = vmatpush1.msra.mxu0 0.0
      %1046 = vmatprep.subr.mxu0 0.0
      %1047 = vmatpush1.msra.mxu0 0.0
      %1048 = vmatprep.subr.mxu0 0.0
      %1049 = vmatpush1.msra.mxu0 0.0
      %1050 = vmatprep.subr.mxu0 0.0
      %1051 = vmatpush1.msra.mxu0 0.0
      %1052 = vmatprep.mubr.f32.mxu0 0.0
      %1053 = vmatmul.mubr.f32.gmra.mrb[0].mxu0 %v941
      %v1054 = vpop.f32.mrb[0].mxu0
      %v1055 = vadd.f32 0.0, %v1054
      %v1056 = vpop.f32.mrb[0].mxu0
      %1057 = vmatprep.mubr.f32.mxu0 0.0
      %1058 = vmatmul.mubr.f32.gmra.mrb[0].mxu0 %v944
      %v1059 = vpop.f32.mrb[0].mxu0
      %v1060 = vadd.f32 0.0, %v1059
      %v1061 = vpop.f32.mrb[0].mxu0
      %1062 = vmatprep.mubr.f32.mxu0 0.0
      %1063 = vmatmul.mubr.f32.gmra.mrb[0].mxu0 %v947
      %v1064 = vpop.f32.mrb[0].mxu0
      %v1065 = vadd.f32 0.0, %v1064
      %v1066 = vpop.f32.mrb[0].mxu0
      %1067 = vmatprep.mubr.f32.mxu0 0.0
      %1068 = vmatmul.mubr.f32.gmra.mrb[0].mxu0 %v950
      %v1069 = vpop.f32.mrb[0].mxu0
      %v1070 = vadd.f32 0.0, %v1069
      %v1071 = vpop.f32.mrb[0].mxu0
      %1072 = vmatprep.mubr.f32.mxu0 0.0
      %1073 = vmatmul.mubr.f32.gmra.mrb[0].mxu0 %v953
      %v1074 = vpop.f32.mrb[0].mxu0
      %v1075 = vadd.f32 0.0, %v1074
      %v1076 = vpop.f32.mrb[0].mxu0
      %1077 = vmatprep.mubr.f32.mxu0 0.0
      %1078 = vmatmul.mubr.f32.gmra.mrb[0].mxu0 %v956
      %v1079 = vpop.f32.mrb[0].mxu0
      %v1080 = vadd.f32 0.0, %v1079
      %v1081 = vpop.f32.mrb[0].mxu0
      %1082 = vmatprep.mubr.f32.mxu0 0.0
      %1083 = vmatmul.mubr.f32.gmra.mrb[0].mxu0 %v959
      %v1084 = vpop.f32.mrb[0].mxu0
      %v1085 = vadd.f32 0.0, %v1084
      %v1086 = vpop.f32.mrb[0].mxu0
      %1087 = vmatprep.mubr.f32.mxu0 0.0
      %1088 = vmatmul.mubr.f32.gmra.mrb[0].mxu0 %v962
      %v1089 = vpop.f32.mrb[0].mxu0
      %v1090 = vadd.f32 0.0, %v1089
      %v1091 = vpop.f32.mrb[0].mxu0
      %1092 = vmatprep.mubr.f32.mxu0 0.0
      %1093 = vmatmul.mubr.f32.gmra.mrb[0].mxu0 %v965
      %v1094 = vpop.f32.mrb[0].mxu0
      %v1095 = vadd.f32 0.0, %v1094
      %v1096 = vpop.f32.mrb[0].mxu0
      %1097 = vmatprep.mubr.f32.mxu0 0.0
      %1098 = vmatmul.mubr.f32.gmra.mrb[0].mxu0 %v968
      %v1099 = vpop.f32.mrb[0].mxu0
      %v1100 = vadd.f32 0.0, %v1099
      %v1101 = vpop.f32.mrb[0].mxu0
      %1102 = vmatprep.mubr.f32.mxu0 0.0
      %1103 = vmatmul.mubr.f32.gmra.mrb[0].mxu0 %v971
      %v1104 = vpop.f32.mrb[0].mxu0
      %v1105 = vadd.f32 0.0, %v1104
      %v1106 = vpop.f32.mrb[0].mxu0
      %1107 = vmatprep.mubr.f32.mxu0 0.0
      %1108 = vmatmul.mubr.f32.gmra.mrb[0].mxu0 %v974
      %v1109 = vpop.f32.mrb[0].mxu0
      %v1110 = vadd.f32 0.0, %v1109
      %v1111 = vpop.f32.mrb[0].mxu0
      %1112 = vmatprep.mubr.f32.mxu0 0.0
      %1113 = vmatmul.mubr.f32.gmra.mrb[0].mxu0 %v977
      %v1114 = vpop.f32.mrb[0].mxu0
      %v1115 = vadd.f32 0.0, %v1114
      %v1116 = vpop.f32.mrb[0].mxu0
      %1117 = vmatprep.mubr.f32.mxu0 0.0
      %1118 = vmatmul.mubr.f32.gmra.mrb[0].mxu0 %v980
      %v1119 = vpop.f32.mrb[0].mxu0
      %v1120 = vadd.f32 0.0, %v1119
      %v1121 = vpop.f32.mrb[0].mxu0
      %1122 = vmatprep.mubr.f32.mxu0 0.0
      %1123 = vmatmul.mubr.f32.gmra.mrb[0].mxu0 %v983
      %v1124 = vpop.f32.mrb[0].mxu0
      %v1125 = vadd.f32 0.0, %v1124
      %v1126 = vpop.f32.mrb[0].mxu0
      %1127 = vmatprep.mubr.f32.mxu0 0.0
      %1128 = vmatmul.mubr.f32.gmra.mrb[0].mxu0 %v986
      %v1129 = vpop.f32.mrb[0].mxu0
      %v1130 = vadd.f32 0.0, %v1129
      %v1131 = vpop.f32.mrb[0].mxu0
      %1132 = vdwg.mxu0
      %v1133 = vmul.f32 %v1055, %v650
      %v1134 = vmul.f32 %v1060, %v651
      %v1135 = vmul.f32 %v1065, %v652
      %v1136 = vmul.f32 %v1070, %v653
      %v1137 = vmul.f32 %v1075, %v654
      %v1138 = vmul.f32 %v1080, %v655
      %v1139 = vmul.f32 %v1085, %v656
      %v1140 = vmul.f32 %v1090, %v657
      %v1141 = vmul.f32 %v1095, %v658
      %v1142 = vmul.f32 %v1100, %v659
      %v1143 = vmul.f32 %v1105, %v660
      %v1144 = vmul.f32 %v1110, %v661
      %v1145 = vmul.f32 %v1115, %v662
      %v1146 = vmul.f32 %v1120, %v663
      %v1147 = vmul.f32 %v1125, %v664
      %v1148 = vmul.f32 %v1130, %v665
      %v1149 = vld [vmem:[%s3 + $0x108] sm:$0xff]
      %v1150 = vld [vmem:[%s3 + $0x110] sm:$0xff]
      %v1151 = vld [vmem:[%s3 + $0x118] sm:$0xff]
      %v1152 = vld [vmem:[%s3 + $0x120] sm:$0xff]
      %v1153 = vld [vmem:[%s3 + $0x128] sm:$0xff]
      %v1154 = vld [vmem:[%s3 + $0x130] sm:$0xff]
      %v1155 = vld [vmem:[%s3 + $0x138] sm:$0xff]
      %v1156 = vld [vmem:[%s3 + $0x140] sm:$0xff]
      %v1157 = vld [vmem:[%s3 + $0x148] sm:$0xff]
      %v1158 = vld [vmem:[%s3 + $0x150] sm:$0xff]
      %v1159 = vld [vmem:[%s3 + $0x158] sm:$0xff]
      %v1160 = vld [vmem:[%s3 + $0x160] sm:$0xff]
      %v1161 = vld [vmem:[%s3 + $0x168] sm:$0xff]
      %v1162 = vld [vmem:[%s3 + $0x170] sm:$0xff]
      %v1163 = vld [vmem:[%s3 + $0x178] sm:$0xff]
      %v1164 = vld [vmem:[%s3 + $0x180] sm:$0xff]
      %v1165 = vadd.f32 %v1133, %v1149
      %v1166 = vadd.f32 %v1134, %v1150
      %v1167 = vadd.f32 %v1135, %v1151
      %v1168 = vadd.f32 %v1136, %v1152
      %v1169 = vadd.f32 %v1137, %v1153
      %v1170 = vadd.f32 %v1138, %v1154
      %v1171 = vadd.f32 %v1139, %v1155
      %v1172 = vadd.f32 %v1140, %v1156
      %v1173 = vadd.f32 %v1141, %v1157
      %v1174 = vadd.f32 %v1142, %v1158
      %v1175 = vadd.f32 %v1143, %v1159
      %v1176 = vadd.f32 %v1144, %v1160
      %v1177 = vadd.f32 %v1145, %v1161
      %v1178 = vadd.f32 %v1146, %v1162
      %v1179 = vadd.f32 %v1147, %v1163
      %v1180 = vadd.f32 %v1148, %v1164
      %v1182 = vsel %vm682, %v338, 0
      %v1185 = vsel %vm682, %v343, 0
      %v1188 = vsel %vm682, %v908, 0
      %v1191 = vsel %vm682, %v909, 0
      %v1194 = vsel %vm682, %v910, 0
      %v1197 = vsel %vm682, %v911, 0
      %1199 = vmatprep.subr.mxu0 0.0
      %1200 = vmatpush1.xpose.msra.mxu0 %v1188
      %1201 = vmatprep.subr.mxu0 0.0
      %1202 = vmatpush1.xpose.msra.mxu0 %v1191
      %1203 = vmatprep.subr.mxu0 0.0
      %1204 = vmatpush1.xpose.msra.mxu0 %v1194
      %1205 = vmatprep.subr.mxu0 0.0
      %1206 = vmatpush1.xpose.msra.mxu0 %v1197
      %1207 = vmatprep.subr.mxu0 0.0
      %1208 = vmatpush1.xpose.msra.mxu0 0.0
      %1209 = vmatprep.subr.mxu0 0.0
      %1210 = vmatpush1.xpose.msra.mxu0 0.0
      %1211 = vmatprep.subr.mxu0 0.0
      %1212 = vmatpush1.xpose.msra.mxu0 0.0
      %1213 = vmatprep.subr.mxu0 0.0
      %1214 = vmatpush1.xpose.msra.mxu0 0.0
      %1215 = vmatprep.subr.mxu0 0.0
      %1216 = vmatpush1.xpose.msra.mxu0 0.0
      %1217 = vmatprep.subr.mxu0 0.0
      %1218 = vmatpush1.xpose.msra.mxu0 0.0
      %1219 = vmatprep.subr.mxu0 0.0
      %1220 = vmatpush1.xpose.msra.mxu0 0.0
      %1221 = vmatprep.subr.mxu0 0.0
      %1222 = vmatpush1.xpose.msra.mxu0 0.0
      %1223 = vmatprep.subr.mxu0 0.0
      %1224 = vmatpush1.xpose.msra.mxu0 0.0
      %1225 = vmatprep.subr.mxu0 0.0
      %1226 = vmatpush1.xpose.msra.mxu0 0.0
      %1227 = vmatprep.subr.mxu0 0.0
      %1228 = vmatpush1.xpose.msra.mxu0 0.0
      %1229 = vmatprep.subr.mxu0 0.0
      %1230 = vmatpush1.xpose.msra.mxu0 0.0
      %1231 = vmatprep.subr.mxu0 0.0
      %1232 = vmatpush1.xpose.msra.mxu0 0.0
      %1233 = vmatprep.subr.mxu0 0.0
      %1234 = vmatpush1.xpose.msra.mxu0 0.0
      %1235 = vmatprep.subr.mxu0 0.0
      %1236 = vmatpush1.xpose.msra.mxu0 0.0
      %1237 = vmatprep.subr.mxu0 0.0
      %1238 = vmatpush1.xpose.msra.mxu0 0.0
      %1239 = vmatprep.subr.mxu0 0.0
      %1240 = vmatpush1.xpose.msra.mxu0 0.0
      %1241 = vmatprep.subr.mxu0 0.0
      %1242 = vmatpush1.xpose.msra.mxu0 0.0
      %1243 = vmatprep.subr.mxu0 0.0
      %1244 = vmatpush1.xpose.msra.mxu0 0.0
      %1245 = vmatprep.subr.mxu0 0.0
      %1246 = vmatpush1.xpose.msra.mxu0 0.0
      %1247 = vmatprep.subr.mxu0 0.0
      %1248 = vmatpush1.xpose.msra.mxu0 0.0
      %1249 = vmatprep.subr.mxu0 0.0
      %1250 = vmatpush1.xpose.msra.mxu0 0.0
      %1251 = vmatprep.subr.mxu0 0.0
      %1252 = vmatpush1.xpose.msra.mxu0 0.0
      %1253 = vmatprep.subr.mxu0 0.0
      %1254 = vmatpush1.xpose.msra.mxu0 0.0
      %1255 = vmatprep.subr.mxu0 0.0
      %1256 = vmatpush1.xpose.msra.mxu0 0.0
      %1257 = vmatprep.subr.mxu0 0.0
      %1258 = vmatpush1.xpose.msra.mxu0 0.0
      %1259 = vmatprep.subr.mxu0 0.0
      %1260 = vmatpush1.xpose.msra.mxu0 0.0
      %1261 = vmatprep.subr.mxu0 0.0
      %1262 = vmatpush1.xpose.msra.mxu0 0.0
      %1263 = vmatprep.mubr.f32.mxu0 0.0
      %1264 = vmatmul.mubr.f32.gmra.mrb[0].mxu0 %v1182
      %v1265 = vpop.f32.mrb[0].mxu0
      %v1266 = vadd.f32 0.0, %v1265
      %v1267 = vpop.f32.mrb[0].mxu0
      %1268 = vmatprep.mubr.f32.mxu0 0.0
      %1269 = vmatmul.mubr.f32.gmra.mrb[0].mxu0 %v1185
      %v1270 = vpop.f32.mrb[0].mxu0
      %v1271 = vadd.f32 0.0, %v1270
      %v1272 = vpop.f32.mrb[0].mxu0
      %1273 = vdwg.mxu0
      %v1275 = vsel %vm682, %v348, 0
      %v1278 = vsel %vm682, %v353, 0
      %v1281 = vsel %vm682, %v912, 0
      %v1284 = vsel %vm682, %v913, 0
      %v1287 = vsel %vm682, %v914, 0
      %v1290 = vsel %vm682, %v915, 0
      %1292 = vmatprep.subr.mxu0 0.0
      %1293 = vmatpush1.xpose.msra.mxu0 %v1281
      %1294 = vmatprep.subr.mxu0 0.0
      %1295 = vmatpush1.xpose.msra.mxu0 %v1284
      %1296 = vmatprep.subr.mxu0 0.0
      %1297 = vmatpush1.xpose.msra.mxu0 %v1287
      %1298 = vmatprep.subr.mxu0 0.0
      %1299 = vmatpush1.xpose.msra.mxu0 %v1290
      %1300 = vmatprep.subr.mxu0 0.0
      %1301 = vmatpush1.xpose.msra.mxu0 0.0
      %1302 = vmatprep.subr.mxu0 0.0
      %1303 = vmatpush1.xpose.msra.mxu0 0.0
      %1304 = vmatprep.subr.mxu0 0.0
      %1305 = vmatpush1.xpose.msra.mxu0 0.0
      %1306 = vmatprep.subr.mxu0 0.0
      %1307 = vmatpush1.xpose.msra.mxu0 0.0
      %1308 = vmatprep.subr.mxu0 0.0
      %1309 = vmatpush1.xpose.msra.mxu0 0.0
      %1310 = vmatprep.subr.mxu0 0.0
      %1311 = vmatpush1.xpose.msra.mxu0 0.0
      %1312 = vmatprep.subr.mxu0 0.0
      %1313 = vmatpush1.xpose.msra.mxu0 0.0
      %1314 = vmatprep.subr.mxu0 0.0
      %1315 = vmatpush1.xpose.msra.mxu0 0.0
      %1316 = vmatprep.subr.mxu0 0.0
      %1317 = vmatpush1.xpose.msra.mxu0 0.0
      %1318 = vmatprep.subr.mxu0 0.0
      %1319 = vmatpush1.xpose.msra.mxu0 0.0
      %1320 = vmatprep.subr.mxu0 0.0
      %1321 = vmatpush1.xpose.msra.mxu0 0.0
      %1322 = vmatprep.subr.mxu0 0.0
      %1323 = vmatpush1.xpose.msra.mxu0 0.0
      %1324 = vmatprep.subr.mxu0 0.0
      %1325 = vmatpush1.xpose.msra.mxu0 0.0
      %1326 = vmatprep.subr.mxu0 0.0
      %1327 = vmatpush1.xpose.msra.mxu0 0.0
      %1328 = vmatprep.subr.mxu0 0.0
      %1329 = vmatpush1.xpose.msra.mxu0 0.0
      %1330 = vmatprep.subr.mxu0 0.0
      %1331 = vmatpush1.xpose.msra.mxu0 0.0
      %1332 = vmatprep.subr.mxu0 0.0
      %1333 = vmatpush1.xpose.msra.mxu0 0.0
      %1334 = vmatprep.subr.mxu0 0.0
      %1335 = vmatpush1.xpose.msra.mxu0 0.0
      %1336 = vmatprep.subr.mxu0 0.0
      %1337 = vmatpush1.xpose.msra.mxu0 0.0
      %1338 = vmatprep.subr.mxu0 0.0
      %1339 = vmatpush1.xpose.msra.mxu0 0.0
      %1340 = vmatprep.subr.mxu0 0.0
      %1341 = vmatpush1.xpose.msra.mxu0 0.0
      %1342 = vmatprep.subr.mxu0 0.0
      %1343 = vmatpush1.xpose.msra.mxu0 0.0
      %1344 = vmatprep.subr.mxu0 0.0
      %1345 = vmatpush1.xpose.msra.mxu0 0.0
      %1346 = vmatprep.subr.mxu0 0.0
      %1347 = vmatpush1.xpose.msra.mxu0 0.0
      %1348 = vmatprep.subr.mxu0 0.0
      %1349 = vmatpush1.xpose.msra.mxu0 0.0
      %1350 = vmatprep.subr.mxu0 0.0
      %1351 = vmatpush1.xpose.msra.mxu0 0.0
      %1352 = vmatprep.subr.mxu0 0.0
      %1353 = vmatpush1.xpose.msra.mxu0 0.0
      %1354 = vmatprep.subr.mxu0 0.0
      %1355 = vmatpush1.xpose.msra.mxu0 0.0
      %1356 = vmatprep.mubr.f32.mxu0 0.0
      %1357 = vmatmul.mubr.f32.gmra.mrb[0].mxu0 %v1275
      %v1358 = vpop.f32.mrb[0].mxu0
      %v1359 = vadd.f32 0.0, %v1358
      %v1360 = vpop.f32.mrb[0].mxu0
      %1361 = vmatprep.mubr.f32.mxu0 0.0
      %1362 = vmatmul.mubr.f32.gmra.mrb[0].mxu0 %v1278
      %v1363 = vpop.f32.mrb[0].mxu0
      %v1364 = vadd.f32 0.0, %v1363
      %v1365 = vpop.f32.mrb[0].mxu0
      %1366 = vdwg.mxu0
      %v1368 = vsel %vm682, %v358, 0
      %v1371 = vsel %vm682, %v363, 0
      %v1374 = vsel %vm682, %v916, 0
      %v1377 = vsel %vm682, %v917, 0
      %v1380 = vsel %vm682, %v918, 0
      %v1383 = vsel %vm682, %v919, 0
      %1385 = vmatprep.subr.mxu0 0.0
      %1386 = vmatpush1.xpose.msra.mxu0 %v1374
      %1387 = vmatprep.subr.mxu0 0.0
      %1388 = vmatpush1.xpose.msra.mxu0 %v1377
      %1389 = vmatprep.subr.mxu0 0.0
      %1390 = vmatpush1.xpose.msra.mxu0 %v1380
      %1391 = vmatprep.subr.mxu0 0.0
      %1392 = vmatpush1.xpose.msra.mxu0 %v1383
      %1393 = vmatprep.subr.mxu0 0.0
      %1394 = vmatpush1.xpose.msra.mxu0 0.0
      %1395 = vmatprep.subr.mxu0 0.0
      %1396 = vmatpush1.xpose.msra.mxu0 0.0
      %1397 = vmatprep.subr.mxu0 0.0
      %1398 = vmatpush1.xpose.msra.mxu0 0.0
      %1399 = vmatprep.subr.mxu0 0.0
      %1400 = vmatpush1.xpose.msra.mxu0 0.0
      %1401 = vmatprep.subr.mxu0 0.0
      %1402 = vmatpush1.xpose.msra.mxu0 0.0
      %1403 = vmatprep.subr.mxu0 0.0
      %1404 = vmatpush1.xpose.msra.mxu0 0.0
      %1405 = vmatprep.subr.mxu0 0.0
      %1406 = vmatpush1.xpose.msra.mxu0 0.0
      %1407 = vmatprep.subr.mxu0 0.0
      %1408 = vmatpush1.xpose.msra.mxu0 0.0
      %1409 = vmatprep.subr.mxu0 0.0
      %1410 = vmatpush1.xpose.msra.mxu0 0.0
      %1411 = vmatprep.subr.mxu0 0.0
      %1412 = vmatpush1.xpose.msra.mxu0 0.0
      %1413 = vmatprep.subr.mxu0 0.0
      %1414 = vmatpush1.xpose.msra.mxu0 0.0
      %1415 = vmatprep.subr.mxu0 0.0
      %1416 = vmatpush1.xpose.msra.mxu0 0.0
      %1417 = vmatprep.subr.mxu0 0.0
      %1418 = vmatpush1.xpose.msra.mxu0 0.0
      %1419 = vmatprep.subr.mxu0 0.0
      %1420 = vmatpush1.xpose.msra.mxu0 0.0
      %1421 = vmatprep.subr.mxu0 0.0
      %1422 = vmatpush1.xpose.msra.mxu0 0.0
      %1423 = vmatprep.subr.mxu0 0.0
      %1424 = vmatpush1.xpose.msra.mxu0 0.0
      %1425 = vmatprep.subr.mxu0 0.0
      %1426 = vmatpush1.xpose.msra.mxu0 0.0
      %1427 = vmatprep.subr.mxu0 0.0
      %1428 = vmatpush1.xpose.msra.mxu0 0.0
      %1429 = vmatprep.subr.mxu0 0.0
      %1430 = vmatpush1.xpose.msra.mxu0 0.0
      %1431 = vmatprep.subr.mxu0 0.0
      %1432 = vmatpush1.xpose.msra.mxu0 0.0
      %1433 = vmatprep.subr.mxu0 0.0
      %1434 = vmatpush1.xpose.msra.mxu0 0.0
      %1435 = vmatprep.subr.mxu0 0.0
      %1436 = vmatpush1.xpose.msra.mxu0 0.0
      %1437 = vmatprep.subr.mxu0 0.0
      %1438 = vmatpush1.xpose.msra.mxu0 0.0
      %1439 = vmatprep.subr.mxu0 0.0
      %1440 = vmatpush1.xpose.msra.mxu0 0.0
      %1441 = vmatprep.subr.mxu0 0.0
      %1442 = vmatpush1.xpose.msra.mxu0 0.0
      %1443 = vmatprep.subr.mxu0 0.0
      %1444 = vmatpush1.xpose.msra.mxu0 0.0
      %1445 = vmatprep.subr.mxu0 0.0
      %1446 = vmatpush1.xpose.msra.mxu0 0.0
      %1447 = vmatprep.subr.mxu0 0.0
      %1448 = vmatpush1.xpose.msra.mxu0 0.0
      %1449 = vmatprep.mubr.f32.mxu0 0.0
      %1450 = vmatmul.mubr.f32.gmra.mrb[0].mxu0 %v1368
      %v1451 = vpop.f32.mrb[0].mxu0
      %v1452 = vadd.f32 0.0, %v1451
      %v1453 = vpop.f32.mrb[0].mxu0
      %1454 = vmatprep.mubr.f32.mxu0 0.0
      %1455 = vmatmul.mubr.f32.gmra.mrb[0].mxu0 %v1371
      %v1456 = vpop.f32.mrb[0].mxu0
      %v1457 = vadd.f32 0.0, %v1456
      %v1458 = vpop.f32.mrb[0].mxu0
      %1459 = vdwg.mxu0
      %v1461 = vsel %vm682, %v368, 0
      %v1464 = vsel %vm682, %v373, 0
      %v1467 = vsel %vm682, %v920, 0
      %v1470 = vsel %vm682, %v921, 0
      %v1473 = vsel %vm682, %v922, 0
      %v1476 = vsel %vm682, %v923, 0
      %1478 = vmatprep.subr.mxu0 0.0
      %1479 = vmatpush1.xpose.msra.mxu0 %v1467
      %1480 = vmatprep.subr.mxu0 0.0
      %1481 = vmatpush1.xpose.msra.mxu0 %v1470
      %1482 = vmatprep.subr.mxu0 0.0
      %1483 = vmatpush1.xpose.msra.mxu0 %v1473
      %1484 = vmatprep.subr.mxu0 0.0
      %1485 = vmatpush1.xpose.msra.mxu0 %v1476
      %1486 = vmatprep.subr.mxu0 0.0
      %1487 = vmatpush1.xpose.msra.mxu0 0.0
      %1488 = vmatprep.subr.mxu0 0.0
      %1489 = vmatpush1.xpose.msra.mxu0 0.0
      %1490 = vmatprep.subr.mxu0 0.0
      %1491 = vmatpush1.xpose.msra.mxu0 0.0
      %1492 = vmatprep.subr.mxu0 0.0
      %1493 = vmatpush1.xpose.msra.mxu0 0.0
      %1494 = vmatprep.subr.mxu0 0.0
      %1495 = vmatpush1.xpose.msra.mxu0 0.0
      %1496 = vmatprep.subr.mxu0 0.0
      %1497 = vmatpush1.xpose.msra.mxu0 0.0
      %1498 = vmatprep.subr.mxu0 0.0
      %1499 = vmatpush1.xpose.msra.mxu0 0.0
      %1500 = vmatprep.subr.mxu0 0.0
      %1501 = vmatpush1.xpose.msra.mxu0 0.0
      %1502 = vmatprep.subr.mxu0 0.0
      %1503 = vmatpush1.xpose.msra.mxu0 0.0
      %1504 = vmatprep.subr.mxu0 0.0
      %1505 = vmatpush1.xpose.msra.mxu0 0.0
      %1506 = vmatprep.subr.mxu0 0.0
      %1507 = vmatpush1.xpose.msra.mxu0 0.0
      %1508 = vmatprep.subr.mxu0 0.0
      %1509 = vmatpush1.xpose.msra.mxu0 0.0
      %1510 = vmatprep.subr.mxu0 0.0
      %1511 = vmatpush1.xpose.msra.mxu0 0.0
      %1512 = vmatprep.subr.mxu0 0.0
      %1513 = vmatpush1.xpose.msra.mxu0 0.0
      %1514 = vmatprep.subr.mxu0 0.0
      %1515 = vmatpush1.xpose.msra.mxu0 0.0
      %1516 = vmatprep.subr.mxu0 0.0
      %1517 = vmatpush1.xpose.msra.mxu0 0.0
      %1518 = vmatprep.subr.mxu0 0.0
      %1519 = vmatpush1.xpose.msra.mxu0 0.0
      %1520 = vmatprep.subr.mxu0 0.0
      %1521 = vmatpush1.xpose.msra.mxu0 0.0
      %1522 = vmatprep.subr.mxu0 0.0
      %1523 = vmatpush1.xpose.msra.mxu0 0.0
      %1524 = vmatprep.subr.mxu0 0.0
      %1525 = vmatpush1.xpose.msra.mxu0 0.0
      %1526 = vmatprep.subr.mxu0 0.0
      %1527 = vmatpush1.xpose.msra.mxu0 0.0
      %1528 = vmatprep.subr.mxu0 0.0
      %1529 = vmatpush1.xpose.msra.mxu0 0.0
      %1530 = vmatprep.subr.mxu0 0.0
      %1531 = vmatpush1.xpose.msra.mxu0 0.0
      %1532 = vmatprep.subr.mxu0 0.0
      %1533 = vmatpush1.xpose.msra.mxu0 0.0
      %1534 = vmatprep.subr.mxu0 0.0
      %1535 = vmatpush1.xpose.msra.mxu0 0.0
      %1536 = vmatprep.subr.mxu0 0.0
      %1537 = vmatpush1.xpose.msra.mxu0 0.0
      %1538 = vmatprep.subr.mxu0 0.0
      %1539 = vmatpush1.xpose.msra.mxu0 0.0
      %1540 = vmatprep.subr.mxu0 0.0
      %1541 = vmatpush1.xpose.msra.mxu0 0.0
      %1542 = vmatprep.mubr.f32.mxu0 0.0
      %1543 = vmatmul.mubr.f32.gmra.mrb[0].mxu0 %v1461
      %v1544 = vpop.f32.mrb[0].mxu0
      %v1545 = vadd.f32 0.0, %v1544
      %v1546 = vpop.f32.mrb[0].mxu0
      %1547 = vmatprep.mubr.f32.mxu0 0.0
      %1548 = vmatmul.mubr.f32.gmra.mrb[0].mxu0 %v1464
      %v1549 = vpop.f32.mrb[0].mxu0
      %v1550 = vadd.f32 0.0, %v1549
      %v1551 = vpop.f32.mrb[0].mxu0
      %1552 = vdwg.mxu0
      %v1553 = vsel %vm222, %v1266, -inf
      %1554 = vmax.xlane.f32.xlu0 %v1553
      %v1555 = vpop.xlane.xlu0 %1554
      %v1556 = vsel %vm222, %v1271, -inf
      %1557 = vmax.xlane.f32.xlu0 %v1556
      %v1558 = vpop.xlane.xlu0 %1557
      %v1559 = vsel %vm222, %v1359, -inf
      %1560 = vmax.xlane.f32.xlu0 %v1559
      %v1561 = vpop.xlane.xlu0 %1560
      %v1562 = vsel %vm222, %v1364, -inf
      %1563 = vmax.xlane.f32.xlu0 %v1562
      %v1564 = vpop.xlane.xlu0 %1563
      %v1565 = vsel %vm222, %v1452, -inf
      %1566 = vmax.xlane.f32.xlu0 %v1565
      %v1567 = vpop.xlane.xlu0 %1566
      %v1568 = vsel %vm222, %v1457, -inf
      %1569 = vmax.xlane.f32.xlu0 %v1568
      %v1570 = vpop.xlane.xlu0 %1569
      %v1571 = vsel %vm222, %v1545, -inf
      %1572 = vmax.xlane.f32.xlu0 %v1571
      %v1573 = vpop.xlane.xlu0 %1572
      %v1574 = vsel %vm222, %v1550, -inf
      %1575 = vmax.xlane.f32.xlu0 %v1574
      %v1576 = vpop.xlane.xlu0 %1575
      %v1577 = vsub.f32 %v1266, %v1555
      %v1578 = vsub.f32 %v1271, %v1558
      %v1579 = vsub.f32 %v1359, %v1561
      %v1580 = vsub.f32 %v1364, %v1564
      %v1581 = vsub.f32 %v1452, %v1567
      %v1582 = vsub.f32 %v1457, %v1570
      %v1583 = vsub.f32 %v1545, %v1573
      %v1584 = vsub.f32 %v1550, %v1576
      %v1585 = vmul.f32 %v1577, 1.442695
      %v1586 = vpow.pop %v1585
      %v1587 = vmul.f32 %v1578, 1.442695
      %v1588 = vpow.pop %v1587
      %v1589 = vmul.f32 %v1579, 1.442695
      %v1590 = vpow.pop %v1589
      %v1591 = vmul.f32 %v1580, 1.442695
      %v1592 = vpow.pop %v1591
      %v1593 = vmul.f32 %v1581, 1.442695
      %v1594 = vpow.pop %v1593
      %v1595 = vmul.f32 %v1582, 1.442695
      %v1596 = vpow.pop %v1595
      %v1597 = vmul.f32 %v1583, 1.442695
      %v1598 = vpow.pop %v1597
      %v1599 = vmul.f32 %v1584, 1.442695
      %v1600 = vpow.pop %v1599
      %v1602 = vsel %vm222, %v1586, 0
      %v1605 = vsel %vm222, %v1588, 0
      %1607 = vmatprep.subr.mxu0 0.0
      %1608 = vmatpush1.msra.mxu0 %v1165
      %1609 = vmatprep.subr.mxu0 0.0
      %1610 = vmatpush1.msra.mxu0 %v1166
      %1611 = vmatprep.subr.mxu0 0.0
      %1612 = vmatpush1.msra.mxu0 %v1167
      %1613 = vmatprep.subr.mxu0 0.0
      %1614 = vmatpush1.msra.mxu0 %v1168
      %1615 = vmatprep.subr.mxu0 0.0
      %1616 = vmatpush1.msra.mxu0 0.0
      %1617 = vmatprep.subr.mxu0 0.0
      %1618 = vmatpush1.msra.mxu0 0.0
      %1619 = vmatprep.subr.mxu0 0.0
      %1620 = vmatpush1.msra.mxu0 0.0
      %1621 = vmatprep.subr.mxu0 0.0
      %1622 = vmatpush1.msra.mxu0 0.0
      %1623 = vmatprep.subr.mxu0 0.0
      %1624 = vmatpush1.msra.mxu0 0.0
      %1625 = vmatprep.subr.mxu0 0.0
      %1626 = vmatpush1.msra.mxu0 0.0
      %1627 = vmatprep.subr.mxu0 0.0
      %1628 = vmatpush1.msra.mxu0 0.0
      %1629 = vmatprep.subr.mxu0 0.0
      %1630 = vmatpush1.msra.mxu0 0.0
      %1631 = vmatprep.subr.mxu0 0.0
      %1632 = vmatpush1.msra.mxu0 0.0
      %1633 = vmatprep.subr.mxu0 0.0
      %1634 = vmatpush1.msra.mxu0 0.0
      %1635 = vmatprep.subr.mxu0 0.0
      %1636 = vmatpush1.msra.mxu0 0.0
      %1637 = vmatprep.subr.mxu0 0.0
      %1638 = vmatpush1.msra.mxu0 0.0
      %1639 = vmatprep.subr.mxu0 0.0
      %1640 = vmatpush1.msra.mxu0 0.0
      %1641 = vmatprep.subr.mxu0 0.0
      %1642 = vmatpush1.msra.mxu0 0.0
      %1643 = vmatprep.subr.mxu0 0.0
      %1644 = vmatpush1.msra.mxu0 0.0
      %1645 = vmatprep.subr.mxu0 0.0
      %1646 = vmatpush1.msra.mxu0 0.0
      %1647 = vmatprep.subr.mxu0 0.0
      %1648 = vmatpush1.msra.mxu0 0.0
      %1649 = vmatprep.subr.mxu0 0.0
      %1650 = vmatpush1.msra.mxu0 0.0
      %1651 = vmatprep.subr.mxu0 0.0
      %1652 = vmatpush1.msra.mxu0 0.0
      %1653 = vmatprep.subr.mxu0 0.0
      %1654 = vmatpush1.msra.mxu0 0.0
      %1655 = vmatprep.subr.mxu0 0.0
      %1656 = vmatpush1.msra.mxu0 0.0
      %1657 = vmatprep.subr.mxu0 0.0
      %1658 = vmatpush1.msra.mxu0 0.0
      %1659 = vmatprep.subr.mxu0 0.0
      %1660 = vmatpush1.msra.mxu0 0.0
      %1661 = vmatprep.subr.mxu0 0.0
      %1662 = vmatpush1.msra.mxu0 0.0
      %1663 = vmatprep.subr.mxu0 0.0
      %1664 = vmatpush1.msra.mxu0 0.0
      %1665 = vmatprep.subr.mxu0 0.0
      %1666 = vmatpush1.msra.mxu0 0.0
      %1667 = vmatprep.subr.mxu0 0.0
      %1668 = vmatpush1.msra.mxu0 0.0
      %1669 = vmatprep.subr.mxu0 0.0
      %1670 = vmatpush1.msra.mxu0 0.0
      %1671 = vmatprep.mubr.f32.mxu0 0.0
      %1672 = vmatmul.mubr.f32.gmra.mrb[0].mxu0 %v1602
      %v1673 = vpop.f32.mrb[0].mxu0
      %v1674 = vadd.f32 0.0, %v1673
      %v1675 = vpop.f32.mrb[0].mxu0
      %1676 = vmatprep.mubr.f32.mxu0 0.0
      %1677 = vmatmul.mubr.f32.gmra.mrb[0].mxu0 %v1605
      %v1678 = vpop.f32.mrb[0].mxu0
      %v1679 = vadd.f32 0.0, %v1678
      %v1680 = vpop.f32.mrb[0].mxu0
      %1681 = vdwg.mxu0
      %v1683 = vsel %vm222, %v1590, 0
      %v1686 = vsel %vm222, %v1592, 0
      %1688 = vmatprep.subr.mxu0 0.0
      %1689 = vmatpush1.msra.mxu0 %v1169
      %1690 = vmatprep.subr.mxu0 0.0
      %1691 = vmatpush1.msra.mxu0 %v1170
      %1692 = vmatprep.subr.mxu0 0.0
      %1693 = vmatpush1.msra.mxu0 %v1171
      %1694 = vmatprep.subr.mxu0 0.0
      %1695 = vmatpush1.msra.mxu0 %v1172
      %1696 = vmatprep.subr.mxu0 0.0
      %1697 = vmatpush1.msra.mxu0 0.0
      %1698 = vmatprep.subr.mxu0 0.0
      %1699 = vmatpush1.msra.mxu0 0.0
      %1700 = vmatprep.subr.mxu0 0.0
      %1701 = vmatpush1.msra.mxu0 0.0
      %1702 = vmatprep.subr.mxu0 0.0
      %1703 = vmatpush1.msra.mxu0 0.0
      %1704 = vmatprep.subr.mxu0 0.0
      %1705 = vmatpush1.msra.mxu0 0.0
      %1706 = vmatprep.subr.mxu0 0.0
      %1707 = vmatpush1.msra.mxu0 0.0
      %1708 = vmatprep.subr.mxu0 0.0
      %1709 = vmatpush1.msra.mxu0 0.0
      %1710 = vmatprep.subr.mxu0 0.0
      %1711 = vmatpush1.msra.mxu0 0.0
      %1712 = vmatprep.subr.mxu0 0.0
      %1713 = vmatpush1.msra.mxu0 0.0
      %1714 = vmatprep.subr.mxu0 0.0
      %1715 = vmatpush1.msra.mxu0 0.0
      %1716 = vmatprep.subr.mxu0 0.0
      %1717 = vmatpush1.msra.mxu0 0.0
      %1718 = vmatprep.subr.mxu0 0.0
      %1719 = vmatpush1.msra.mxu0 0.0
      %1720 = vmatprep.subr.mxu0 0.0
      %1721 = vmatpush1.msra.mxu0 0.0
      %1722 = vmatprep.subr.mxu0 0.0
      %1723 = vmatpush1.msra.mxu0 0.0
      %1724 = vmatprep.subr.mxu0 0.0
      %1725 = vmatpush1.msra.mxu0 0.0
      %1726 = vmatprep.subr.mxu0 0.0
      %1727 = vmatpush1.msra.mxu0 0.0
      %1728 = vmatprep.subr.mxu0 0.0
      %1729 = vmatpush1.msra.mxu0 0.0
      %1730 = vmatprep.subr.mxu0 0.0
      %1731 = vmatpush1.msra.mxu0 0.0
      %1732 = vmatprep.subr.mxu0 0.0
      %1733 = vmatpush1.msra.mxu0 0.0
      %1734 = vmatprep.subr.mxu0 0.0
      %1735 = vmatpush1.msra.mxu0 0.0
      %1736 = vmatprep.subr.mxu0 0.0
      %1737 = vmatpush1.msra.mxu0 0.0
      %1738 = vmatprep.subr.mxu0 0.0
      %1739 = vmatpush1.msra.mxu0 0.0
      %1740 = vmatprep.subr.mxu0 0.0
      %1741 = vmatpush1.msra.mxu0 0.0
      %1742 = vmatprep.subr.mxu0 0.0
      %1743 = vmatpush1.msra.mxu0 0.0
      %1744 = vmatprep.subr.mxu0 0.0
      %1745 = vmatpush1.msra.mxu0 0.0
      %1746 = vmatprep.subr.mxu0 0.0
      %1747 = vmatpush1.msra.mxu0 0.0
      %1748 = vmatprep.subr.mxu0 0.0
      %1749 = vmatpush1.msra.mxu0 0.0
      %1750 = vmatprep.subr.mxu0 0.0
      %1751 = vmatpush1.msra.mxu0 0.0
      %1752 = vmatprep.mubr.f32.mxu0 0.0
      %1753 = vmatmul.mubr.f32.gmra.mrb[0].mxu0 %v1683
      %v1754 = vpop.f32.mrb[0].mxu0
      %v1755 = vadd.f32 0.0, %v1754
      %v1756 = vpop.f32.mrb[0].mxu0
      %1757 = vmatprep.mubr.f32.mxu0 0.0
      %1758 = vmatmul.mubr.f32.gmra.mrb[0].mxu0 %v1686
      %v1759 = vpop.f32.mrb[0].mxu0
      %v1760 = vadd.f32 0.0, %v1759
      %v1761 = vpop.f32.mrb[0].mxu0
      %1762 = vdwg.mxu0
      %v1764 = vsel %vm222, %v1594, 0
      %v1767 = vsel %vm222, %v1596, 0
      %1769 = vmatprep.subr.mxu0 0.0
      %1770 = vmatpush1.msra.mxu0 %v1173
      %1771 = vmatprep.subr.mxu0 0.0
      %1772 = vmatpush1.msra.mxu0 %v1174
      %1773 = vmatprep.subr.mxu0 0.0
      %1774 = vmatpush1.msra.mxu0 %v1175
      %1775 = vmatprep.subr.mxu0 0.0
      %1776 = vmatpush1.msra.mxu0 %v1176
      %1777 = vmatprep.subr.mxu0 0.0
      %1778 = vmatpush1.msra.mxu0 0.0
      %1779 = vmatprep.subr.mxu0 0.0
      %1780 = vmatpush1.msra.mxu0 0.0
      %1781 = vmatprep.subr.mxu0 0.0
      %1782 = vmatpush1.msra.mxu0 0.0
      %1783 = vmatprep.subr.mxu0 0.0
      %1784 = vmatpush1.msra.mxu0 0.0
      %1785 = vmatprep.subr.mxu0 0.0
      %1786 = vmatpush1.msra.mxu0 0.0
      %1787 = vmatprep.subr.mxu0 0.0
      %1788 = vmatpush1.msra.mxu0 0.0
      %1789 = vmatprep.subr.mxu0 0.0
      %1790 = vmatpush1.msra.mxu0 0.0
      %1791 = vmatprep.subr.mxu0 0.0
      %1792 = vmatpush1.msra.mxu0 0.0
      %1793 = vmatprep.subr.mxu0 0.0
      %1794 = vmatpush1.msra.mxu0 0.0
      %1795 = vmatprep.subr.mxu0 0.0
      %1796 = vmatpush1.msra.mxu0 0.0
      %1797 = vmatprep.subr.mxu0 0.0
      %1798 = vmatpush1.msra.mxu0 0.0
      %1799 = vmatprep.subr.mxu0 0.0
      %1800 = vmatpush1.msra.mxu0 0.0
      %1801 = vmatprep.subr.mxu0 0.0
      %1802 = vmatpush1.msra.mxu0 0.0
      %1803 = vmatprep.subr.mxu0 0.0
      %1804 = vmatpush1.msra.mxu0 0.0
      %1805 = vmatprep.subr.mxu0 0.0
      %1806 = vmatpush1.msra.mxu0 0.0
      %1807 = vmatprep.subr.mxu0 0.0
      %1808 = vmatpush1.msra.mxu0 0.0
      %1809 = vmatprep.subr.mxu0 0.0
      %1810 = vmatpush1.msra.mxu0 0.0
      %1811 = vmatprep.subr.mxu0 0.0
      %1812 = vmatpush1.msra.mxu0 0.0
      %1813 = vmatprep.subr.mxu0 0.0
      %1814 = vmatpush1.msra.mxu0 0.0
      %1815 = vmatprep.subr.mxu0 0.0
      %1816 = vmatpush1.msra.mxu0 0.0
      %1817 = vmatprep.subr.mxu0 0.0
      %1818 = vmatpush1.msra.mxu0 0.0
      %1819 = vmatprep.subr.mxu0 0.0
      %1820 = vmatpush1.msra.mxu0 0.0
      %1821 = vmatprep.subr.mxu0 0.0
      %1822 = vmatpush1.msra.mxu0 0.0
      %1823 = vmatprep.subr.mxu0 0.0
      %1824 = vmatpush1.msra.mxu0 0.0
      %1825 = vmatprep.subr.mxu0 0.0
      %1826 = vmatpush1.msra.mxu0 0.0
      %1827 = vmatprep.subr.mxu0 0.0
      %1828 = vmatpush1.msra.mxu0 0.0
      %1829 = vmatprep.subr.mxu0 0.0
      %1830 = vmatpush1.msra.mxu0 0.0
      %1831 = vmatprep.subr.mxu0 0.0
      %1832 = vmatpush1.msra.mxu0 0.0
      %1833 = vmatprep.mubr.f32.mxu0 0.0
      %1834 = vmatmul.mubr.f32.gmra.mrb[0].mxu0 %v1764
      %v1835 = vpop.f32.mrb[0].mxu0
      %v1836 = vadd.f32 0.0, %v1835
      %v1837 = vpop.f32.mrb[0].mxu0
      %1838 = vmatprep.mubr.f32.mxu0 0.0
      %1839 = vmatmul.mubr.f32.gmra.mrb[0].mxu0 %v1767
      %v1840 = vpop.f32.mrb[0].mxu0
      %v1841 = vadd.f32 0.0, %v1840
      %v1842 = vpop.f32.mrb[0].mxu0
      %1843 = vdwg.mxu0
      %v1845 = vsel %vm222, %v1598, 0
      %v1848 = vsel %vm222, %v1600, 0
      %1850 = vmatprep.subr.mxu0 0.0
      %1851 = vmatpush1.msra.mxu0 %v1177
      %1852 = vmatprep.subr.mxu0 0.0
      %1853 = vmatpush1.msra.mxu0 %v1178
      %1854 = vmatprep.subr.mxu0 0.0
      %1855 = vmatpush1.msra.mxu0 %v1179
      %1856 = vmatprep.subr.mxu0 0.0
      %1857 = vmatpush1.msra.mxu0 %v1180
      %1858 = vmatprep.subr.mxu0 0.0
      %1859 = vmatpush1.msra.mxu0 0.0
      %1860 = vmatprep.subr.mxu0 0.0
      %1861 = vmatpush1.msra.mxu0 0.0
      %1862 = vmatprep.subr.mxu0 0.0
      %1863 = vmatpush1.msra.mxu0 0.0
      %1864 = vmatprep.subr.mxu0 0.0
      %1865 = vmatpush1.msra.mxu0 0.0
      %1866 = vmatprep.subr.mxu0 0.0
      %1867 = vmatpush1.msra.mxu0 0.0
      %1868 = vmatprep.subr.mxu0 0.0
      %1869 = vmatpush1.msra.mxu0 0.0
      %1870 = vmatprep.subr.mxu0 0.0
      %1871 = vmatpush1.msra.mxu0 0.0
      %1872 = vmatprep.subr.mxu0 0.0
      %1873 = vmatpush1.msra.mxu0 0.0
      %1874 = vmatprep.subr.mxu0 0.0
      %1875 = vmatpush1.msra.mxu0 0.0
      %1876 = vmatprep.subr.mxu0 0.0
      %1877 = vmatpush1.msra.mxu0 0.0
      %1878 = vmatprep.subr.mxu0 0.0
      %1879 = vmatpush1.msra.mxu0 0.0
      %1880 = vmatprep.subr.mxu0 0.0
      %1881 = vmatpush1.msra.mxu0 0.0
      %1882 = vmatprep.subr.mxu0 0.0
      %1883 = vmatpush1.msra.mxu0 0.0
      %1884 = vmatprep.subr.mxu0 0.0
      %1885 = vmatpush1.msra.mxu0 0.0
      %1886 = vmatprep.subr.mxu0 0.0
      %1887 = vmatpush1.msra.mxu0 0.0
      %1888 = vmatprep.subr.mxu0 0.0
      %1889 = vmatpush1.msra.mxu0 0.0
      %1890 = vmatprep.subr.mxu0 0.0
      %1891 = vmatpush1.msra.mxu0 0.0
      %1892 = vmatprep.subr.mxu0 0.0
      %1893 = vmatpush1.msra.mxu0 0.0
      %1894 = vmatprep.subr.mxu0 0.0
      %1895 = vmatpush1.msra.mxu0 0.0
      %1896 = vmatprep.subr.mxu0 0.0
      %1897 = vmatpush1.msra.mxu0 0.0
      %1898 = vmatprep.subr.mxu0 0.0
      %1899 = vmatpush1.msra.mxu0 0.0
      %1900 = vmatprep.subr.mxu0 0.0
      %1901 = vmatpush1.msra.mxu0 0.0
      %1902 = vmatprep.subr.mxu0 0.0
      %1903 = vmatpush1.msra.mxu0 0.0
      %1904 = vmatprep.subr.mxu0 0.0
      %1905 = vmatpush1.msra.mxu0 0.0
      %1906 = vmatprep.subr.mxu0 0.0
      %1907 = vmatpush1.msra.mxu0 0.0
      %1908 = vmatprep.subr.mxu0 0.0
      %1909 = vmatpush1.msra.mxu0 0.0
      %1910 = vmatprep.subr.mxu0 0.0
      %1911 = vmatpush1.msra.mxu0 0.0
      %1912 = vmatprep.subr.mxu0 0.0
      %1913 = vmatpush1.msra.mxu0 0.0
      %1914 = vmatprep.mubr.f32.mxu0 0.0
      %1915 = vmatmul.mubr.f32.gmra.mrb[0].mxu0 %v1845
      %v1916 = vpop.f32.mrb[0].mxu0
      %v1917 = vadd.f32 0.0, %v1916
      %v1918 = vpop.f32.mrb[0].mxu0
      %1919 = vmatprep.mubr.f32.mxu0 0.0
      %1920 = vmatmul.mubr.f32.gmra.mrb[0].mxu0 %v1848
      %v1921 = vpop.f32.mrb[0].mxu0
      %v1922 = vadd.f32 0.0, %v1921
      %v1923 = vpop.f32.mrb[0].mxu0
      %1924 = vdwg.mxu0
      %v1925 = vld [vmem:[%s3 + $0x8] sm:$0xff]
      %v1926 = vld [vmem:[%s3 + $0x10] sm:$0xff]
      %v1927 = vld [vmem:[%s3 + $0x18] sm:$0xff]
      %v1928 = vld [vmem:[%s3 + $0x20] sm:$0xff]
      %1929 = vmatprep.subr.mxu0 0.0
      %1930 = vmatpush1.msra.mxu0 %v1925
      %1931 = vmatprep.subr.mxu0 0.0
      %1932 = vmatpush1.msra.mxu0 %v1926
      %1933 = vmatprep.subr.mxu0 0.0
      %1934 = vmatpush1.msra.mxu0 %v1927
      %1935 = vmatprep.subr.mxu0 0.0
      %1936 = vmatpush1.msra.mxu0 %v1928
      %1937 = vmatprep.subr.mxu0 0.0
      %1938 = vmatpush1.msra.mxu0 0.0
      %1939 = vmatprep.subr.mxu0 0.0
      %1940 = vmatpush1.msra.mxu0 0.0
      %1941 = vmatprep.subr.mxu0 0.0
      %1942 = vmatpush1.msra.mxu0 0.0
      %1943 = vmatprep.subr.mxu0 0.0
      %1944 = vmatpush1.msra.mxu0 0.0
      %1945 = vmatprep.subr.mxu0 0.0
      %1946 = vmatpush1.msra.mxu0 0.0
      %1947 = vmatprep.subr.mxu0 0.0
      %1948 = vmatpush1.msra.mxu0 0.0
      %1949 = vmatprep.subr.mxu0 0.0
      %1950 = vmatpush1.msra.mxu0 0.0
      %1951 = vmatprep.subr.mxu0 0.0
      %1952 = vmatpush1.msra.mxu0 0.0
      %1953 = vmatprep.subr.mxu0 0.0
      %1954 = vmatpush1.msra.mxu0 0.0
      %1955 = vmatprep.subr.mxu0 0.0
      %1956 = vmatpush1.msra.mxu0 0.0
      %1957 = vmatprep.subr.mxu0 0.0
      %1958 = vmatpush1.msra.mxu0 0.0
      %1959 = vmatprep.subr.mxu0 0.0
      %1960 = vmatpush1.msra.mxu0 0.0
      %1961 = vmatprep.subr.mxu0 0.0
      %1962 = vmatpush1.msra.mxu0 0.0
      %1963 = vmatprep.subr.mxu0 0.0
      %1964 = vmatpush1.msra.mxu0 0.0
      %1965 = vmatprep.subr.mxu0 0.0
      %1966 = vmatpush1.msra.mxu0 0.0
      %1967 = vmatprep.subr.mxu0 0.0
      %1968 = vmatpush1.msra.mxu0 0.0
      %1969 = vmatprep.subr.mxu0 0.0
      %1970 = vmatpush1.msra.mxu0 0.0
      %1971 = vmatprep.subr.mxu0 0.0
      %1972 = vmatpush1.msra.mxu0 0.0
      %1973 = vmatprep.subr.mxu0 0.0
      %1974 = vmatpush1.msra.mxu0 0.0
      %1975 = vmatprep.subr.mxu0 0.0
      %1976 = vmatpush1.msra.mxu0 0.0
      %1977 = vmatprep.subr.mxu0 0.0
      %1978 = vmatpush1.msra.mxu0 0.0
      %1979 = vmatprep.subr.mxu0 0.0
      %1980 = vmatpush1.msra.mxu0 0.0
      %1981 = vmatprep.subr.mxu0 0.0
      %1982 = vmatpush1.msra.mxu0 0.0
      %1983 = vmatprep.subr.mxu0 0.0
      %1984 = vmatpush1.msra.mxu0 0.0
      %1985 = vmatprep.subr.mxu0 0.0
      %1986 = vmatpush1.msra.mxu0 0.0
      %1987 = vmatprep.subr.mxu0 0.0
      %1988 = vmatpush1.msra.mxu0 0.0
      %1989 = vmatprep.subr.mxu0 0.0
      %1990 = vmatpush1.msra.mxu0 0.0
      %1991 = vmatprep.subr.mxu0 0.0
      %1992 = vmatpush1.msra.mxu0 0.0
      %1993 = vmatprep.mubr.f32.mxu0 0.0
      %1994 = vmatmul.mubr.f32.gmra.mrb[0].mxu0 %v1602
      %v1995 = vpop.f32.mrb[0].mxu0
      %v1996 = vadd.f32 0.0, %v1995
      %v1997 = vpop.f32.mrb[0].mxu0
      %1998 = vmatprep.mubr.f32.mxu0 0.0
      %1999 = vmatmul.mubr.f32.gmra.mrb[0].mxu0 %v1605
      %v2000 = vpop.f32.mrb[0].mxu0
      %v2001 = vadd.f32 0.0, %v2000
      %v2002 = vpop.f32.mrb[0].mxu0
      %2003 = vmatprep.mubr.f32.mxu0 0.0
      %2004 = vmatmul.mubr.f32.gmra.mrb[0].mxu0 %v1683
      %v2005 = vpop.f32.mrb[0].mxu0
      %v2006 = vadd.f32 0.0, %v2005
      %v2007 = vpop.f32.mrb[0].mxu0
      %2008 = vmatprep.mubr.f32.mxu0 0.0
      %2009 = vmatmul.mubr.f32.gmra.mrb[0].mxu0 %v1686
      %v2010 = vpop.f32.mrb[0].mxu0
      %v2011 = vadd.f32 0.0, %v2010
      %v2012 = vpop.f32.mrb[0].mxu0
      %2013 = vmatprep.mubr.f32.mxu0 0.0
      %2014 = vmatmul.mubr.f32.gmra.mrb[0].mxu0 %v1764
      %v2015 = vpop.f32.mrb[0].mxu0
      %v2016 = vadd.f32 0.0, %v2015
      %v2017 = vpop.f32.mrb[0].mxu0
      %2018 = vmatprep.mubr.f32.mxu0 0.0
      %2019 = vmatmul.mubr.f32.gmra.mrb[0].mxu0 %v1767
      %v2020 = vpop.f32.mrb[0].mxu0
      %v2021 = vadd.f32 0.0, %v2020
      %v2022 = vpop.f32.mrb[0].mxu0
      %2023 = vmatprep.mubr.f32.mxu0 0.0
      %2024 = vmatmul.mubr.f32.gmra.mrb[0].mxu0 %v1845
      %v2025 = vpop.f32.mrb[0].mxu0
      %v2026 = vadd.f32 0.0, %v2025
      %v2027 = vpop.f32.mrb[0].mxu0
      %2028 = vmatprep.mubr.f32.mxu0 0.0
      %2029 = vmatmul.mubr.f32.gmra.mrb[0].mxu0 %v1848
      %v2030 = vpop.f32.mrb[0].mxu0
      %v2031 = vadd.f32 0.0, %v2030
      %v2032 = vpop.f32.mrb[0].mxu0
      %2033 = vdwg.mxu0
      %v2034 = vrcp.pop %v1996
      %v2035 = vmul.f32 %v1674, %v2034
      %v2036 = vrcp.pop %v2001
      %v2037 = vmul.f32 %v1679, %v2036
      %v2038 = vrcp.pop %v2006
      %v2039 = vmul.f32 %v1755, %v2038
      %v2040 = vrcp.pop %v2011
      %v2041 = vmul.f32 %v1760, %v2040
      %v2042 = vrcp.pop %v2016
      %v2043 = vmul.f32 %v1836, %v2042
      %v2044 = vrcp.pop %v2021
      %v2045 = vmul.f32 %v1841, %v2044
      %v2046 = vrcp.pop %v2026
      %v2047 = vmul.f32 %v1917, %v2046
      %v2048 = vrcp.pop %v2031
      %v2049 = vmul.f32 %v1922, %v2048
      %v2050 = vld [vmem:[%s3 + $0x188] sm:$0xff]
      %v2051 = vld [vmem:[%s3 + $0x190] sm:$0xff]
      %v2053 = vsel %vm682, %v2035, 0
      %v2056 = vsel %vm682, %v2037, 0
      %v2059 = vsel %vm682, %v2039, 0
      %v2062 = vsel %vm682, %v2041, 0
      %v2065 = vsel %vm682, %v2043, 0
      %v2068 = vsel %vm682, %v2045, 0
      %v2071 = vsel %vm682, %v2047, 0
      %v2074 = vsel %vm682, %v2049, 0
      %v2077 = vsel %vm682, %v2050, 0
      %v2080 = vsel %vm682, %v2051, 0
      %2082 = vmatprep.subr.mxu0 0.0
      %2083 = vmatpush1.xpose.msra.mxu0 %v2077
      %2084 = vmatprep.subr.mxu0 0.0
      %2085 = vmatpush1.xpose.msra.mxu0 %v2080
      %2086 = vmatprep.subr.mxu0 0.0
      %2087 = vmatpush1.xpose.msra.mxu0 0.0
      %2088 = vmatprep.subr.mxu0 0.0
      %2089 = vmatpush1.xpose.msra.mxu0 0.0
      %2090 = vmatprep.subr.mxu0 0.0
      %2091 = vmatpush1.xpose.msra.mxu0 0.0
      %2092 = vmatprep.subr.mxu0 0.0
      %2093 = vmatpush1.xpose.msra.mxu0 0.0
      %2094 = vmatprep.subr.mxu0 0.0
      %2095 = vmatpush1.xpose.msra.mxu0 0.0
      %2096 = vmatprep.subr.mxu0 0.0
      %2097 = vmatpush1.xpose.msra.mxu0 0.0
      %2098 = vmatprep.subr.mxu0 0.0
      %2099 = vmatpush1.xpose.msra.mxu0 0.0
      %2100 = vmatprep.subr.mxu0 0.0
      %2101 = vmatpush1.xpose.msra.mxu0 0.0
      %2102 = vmatprep.subr.mxu0 0.0
      %2103 = vmatpush1.xpose.msra.mxu0 0.0
      %2104 = vmatprep.subr.mxu0 0.0
      %2105 = vmatpush1.xpose.msra.mxu0 0.0
      %2106 = vmatprep.subr.mxu0 0.0
      %2107 = vmatpush1.xpose.msra.mxu0 0.0
      %2108 = vmatprep.subr.mxu0 0.0
      %2109 = vmatpush1.xpose.msra.mxu0 0.0
      %2110 = vmatprep.subr.mxu0 0.0
      %2111 = vmatpush1.xpose.msra.mxu0 0.0
      %2112 = vmatprep.subr.mxu0 0.0
      %2113 = vmatpush1.xpose.msra.mxu0 0.0
      %2114 = vmatprep.subr.mxu0 0.0
      %2115 = vmatpush1.xpose.msra.mxu0 0.0
      %2116 = vmatprep.subr.mxu0 0.0
      %2117 = vmatpush1.xpose.msra.mxu0 0.0
      %2118 = vmatprep.subr.mxu0 0.0
      %2119 = vmatpush1.xpose.msra.mxu0 0.0
      %2120 = vmatprep.subr.mxu0 0.0
      %2121 = vmatpush1.xpose.msra.mxu0 0.0
      %2122 = vmatprep.subr.mxu0 0.0
      %2123 = vmatpush1.xpose.msra.mxu0 0.0
      %2124 = vmatprep.subr.mxu0 0.0
      %2125 = vmatpush1.xpose.msra.mxu0 0.0
      %2126 = vmatprep.subr.mxu0 0.0
      %2127 = vmatpush1.xpose.msra.mxu0 0.0
      %2128 = vmatprep.subr.mxu0 0.0
      %2129 = vmatpush1.xpose.msra.mxu0 0.0
      %2130 = vmatprep.subr.mxu0 0.0
      %2131 = vmatpush1.xpose.msra.mxu0 0.0
      %2132 = vmatprep.subr.mxu0 0.0
      %2133 = vmatpush1.xpose.msra.mxu0 0.0
      %2134 = vmatprep.subr.mxu0 0.0
      %2135 = vmatpush1.xpose.msra.mxu0 0.0
      %2136 = vmatprep.subr.mxu0 0.0
      %2137 = vmatpush1.xpose.msra.mxu0 0.0
      %2138 = vmatprep.subr.mxu0 0.0
      %2139 = vmatpush1.xpose.msra.mxu0 0.0
      %2140 = vmatprep.subr.mxu0 0.0
      %2141 = vmatpush1.xpose.msra.mxu0 0.0
      %2142 = vmatprep.subr.mxu0 0.0
      %2143 = vmatpush1.xpose.msra.mxu0 0.0
      %2144 = vmatprep.subr.mxu0 0.0
      %2145 = vmatpush1.xpose.msra.mxu0 0.0
      %2146 = vmatprep.mubr.f32.mxu0 0.0
      %2147 = vmatmul.mubr.f32.gmra.mrb[0].mxu0 %v2053
      %v2148 = vpop.f32.mrb[0].mxu0
      %v2149 = vadd.f32 0.0, %v2148
      %v2150 = vpop.f32.mrb[0].mxu0
      %2151 = vmatprep.mubr.f32.mxu0 0.0
      %2152 = vmatmul.mubr.f32.gmra.mrb[0].mxu0 %v2056
      %v2153 = vpop.f32.mrb[0].mxu0
      %v2154 = vadd.f32 0.0, %v2153
      %v2155 = vpop.f32.mrb[0].mxu0
      %2156 = vmatprep.mubr.f32.mxu0 0.0
      %2157 = vmatmul.mubr.f32.gmra.mrb[0].mxu0 %v2059
      %v2158 = vpop.f32.mrb[0].mxu0
      %v2159 = vadd.f32 0.0, %v2158
      %v2160 = vpop.f32.mrb[0].mxu0
      %2161 = vmatprep.mubr.f32.mxu0 0.0
      %2162 = vmatmul.mubr.f32.gmra.mrb[0].mxu0 %v2062
      %v2163 = vpop.f32.mrb[0].mxu0
      %v2164 = vadd.f32 0.0, %v2163
      %v2165 = vpop.f32.mrb[0].mxu0
      %2166 = vmatprep.mubr.f32.mxu0 0.0
      %2167 = vmatmul.mubr.f32.gmra.mrb[0].mxu0 %v2065
      %v2168 = vpop.f32.mrb[0].mxu0
      %v2169 = vadd.f32 0.0, %v2168
      %v2170 = vpop.f32.mrb[0].mxu0
      %2171 = vmatprep.mubr.f32.mxu0 0.0
      %2172 = vmatmul.mubr.f32.gmra.mrb[0].mxu0 %v2068
      %v2173 = vpop.f32.mrb[0].mxu0
      %v2174 = vadd.f32 0.0, %v2173
      %v2175 = vpop.f32.mrb[0].mxu0
      %2176 = vmatprep.mubr.f32.mxu0 0.0
      %2177 = vmatmul.mubr.f32.gmra.mrb[0].mxu0 %v2071
      %v2178 = vpop.f32.mrb[0].mxu0
      %v2179 = vadd.f32 0.0, %v2178
      %v2180 = vpop.f32.mrb[0].mxu0
      %2181 = vmatprep.mubr.f32.mxu0 0.0
      %2182 = vmatmul.mubr.f32.gmra.mrb[0].mxu0 %v2074
      %v2183 = vpop.f32.mrb[0].mxu0
      %v2184 = vadd.f32 0.0, %v2183
      %v2185 = vpop.f32.mrb[0].mxu0
      %2186 = vdwg.mxu0
      %vm2187 = vcmask 130048
      %2188 = vst.msk [vmem:[%s199] sm:$0xff] %vm2187, %v2149
      %2189 = vst.msk [vmem:[%s199 + $0x8] sm:$0xff] %vm2187, %v2154
      %2190 = vst.msk [vmem:[%s199 + $0x10] sm:$0xff] %vm2187, %v2159
      %2191 = vst.msk [vmem:[%s199 + $0x18] sm:$0xff] %vm2187, %v2164
      %2192 = vst.msk [vmem:[%s199 + $0x20] sm:$0xff] %vm2187, %v2169
      %2193 = vst.msk [vmem:[%s199 + $0x28] sm:$0xff] %vm2187, %v2174
      %2194 = vst.msk [vmem:[%s199 + $0x30] sm:$0xff] %vm2187, %v2179
      %2195 = vst.msk [vmem:[%s199 + $0x38] sm:$0xff] %vm2187, %v2184
      %s2196 = smul.u32 8, %s15
      %p2197 = scmp.lt.s32.totalorder %s2196, 15
      %s2198 = scalar_select %p2197, %s2196, 15
      %s2199 = smul.addr %s2198, 8
      %s2200 = scalar_lea.vmem %s4, %s2199
      // Predicated region
      $region37: #{multihead_linformer.1} parent=35 // pred_check
        %p2201 = pneg %p122
      $region38: #{multihead_linformer.1} parent=35 // pred_check_branch
        %2203 = sbr.rel (%p2201) target = $region40
      $region39: #{multihead_linformer.1} parent=35 // pred_region
        %s2204 = smul.u32 8, %s15
      $region40: #{multihead_linformer.1} parent=35 // pred_fallthru
        _
    $region36: #{multihead_linformer.1} parent=5 // pred_fallthru
      _
    %p2205 = scmp.le.s32.totalorder 2, %s10
    // Predicated region
    $region41: #{multihead_linformer.1} parent=5 // pred_check
      %p2206 = pneg %p2205
    $region42: #{multihead_linformer.1} parent=5 // pred_check_branch
      %2208 = sbr.rel (%p2206) target = $region44
    $region43: #{multihead_linformer.1} parent=5 // pred_region
      %s2209 = ssub.s32 %s10, 2
      // Predicated region
      $region45: #{multihead_linformer.1} parent=43 // pred_check
        %p2210 = pneg %p128
      $region46: #{multihead_linformer.1} parent=43 // pred_check_branch
        %2212 = sbr.rel (%p2210) target = $region48
      $region47: #{multihead_linformer.1} parent=43 // pred_region
        %s2213 = smul.u32 8, %s16
        %p2214 = scmp.lt.s32.totalorder %s2213, 15
        %s2215 = scalar_select %p2214, %s2213, 15
        %s2216 = smul.addr %s2215, 8
        %s2217 = scalar_lea.vmem %s4, %s2216
      $region48: #{multihead_linformer.1} parent=43 // pred_fallthru
        _
    $region44: #{multihead_linformer.1} parent=5 // pred_fallthru
      _
  $region6: #{multihead_linformer.1} parent=0 // loop_footer
    %s14 = sadd.s32 1, %s10
  $region7: #{multihead_linformer.1} parent=0 // loop_footer_branch
    %9 = sbr.rel target = $region3
  $region8: #{multihead_linformer.1} parent=0 // loop_exit
    _

</llo_original>
